<compile_context>
chip_gen: v7x
topology: tpu7x:2x2x1
jax: 0.10.0
libtpu: 0.0.40
codegen_flags: <defaults>
</compile_context>

<pallas_src>
import functools

import jax
import jax.numpy as jnp
from jax.experimental import pallas as pl
from jax.experimental.pallas import tpu as pltpu

NUM_LAYERS = 20            # nn.Sequential of 20 Linear layers in branches[0]
_LANE = 128                # lane width
_SUBLANE = 8               # sublane count
_MAX_TM = 512              # max rows per tile
_FUSED_WEIGHT_BYTES = 12 * 1024 * 1024  # keep double-buffered fused weight stack under this


def _round_up(x, m):
    return (x + m - 1) // m * m


def hit_kernel(x_ref, wt_ref, b_ref, o_ref, y_ref):
    # x_ref : [TM, Fp]          padded input rows (read only at layer-block 0)
    # wt_ref: [LB, Fp, Fp]      this layer-block's transposed weights (W^T)
    # b_ref : [LB, 1, Fp]       this layer-block's biases
    # o_ref : [TM, Fp]          output (written only on the last layer-block)
    # y_ref : [TM, Fp] f32 VMEM scratch carrying the activation across layer blocks
    lb = pl.program_id(1)

    @pl.when(lb == 0)
    def _():
        y_ref[...] = x_ref[...].astype(jnp.float32)

    y = y_ref[...]
    n_local = wt_ref.shape[0]            # LB, static at trace time
    for j in range(n_local):             # static unroll: compile-time weight offsets
        y = jnp.dot(y, wt_ref[j], preferred_element_type=jnp.float32) + b_ref[j]
    y_ref[...] = y

    @pl.when(lb == pl.num_programs(1) - 1)
    def _():
        o_ref[...] = y.astype(o_ref.dtype)


@functools.partial(jax.jit, static_argnames=())
def hit_model_forward(x, w, b):
    """x: (..., F); w: [L, F, F] torch layout [out, in]; b: [L, F]."""
    orig_shape = x.shape
    F = orig_shape[-1]
    x2d = x.reshape(-1, F)
    M = x2d.shape[0]

    # Lane-dense feature axis; sublane-aligned, minimally-padded row tiling.
    Fp = _round_up(max(F, _LANE), _LANE)
    Mp8 = _round_up(M, _SUBLANE)
    n_tiles = -(-Mp8 // _MAX_TM)                          # ceil-div, python int
    TM = _round_up(-(-Mp8 // n_tiles), _SUBLANE)          # per-tile rows (<= 512)
    Mp = TM * n_tiles

    # Pad (zeros in padded lanes stay zero through every affine layer because the
    # padded weight rows/cols and padded bias lanes are zero).
    x_p = jnp.zeros((Mp, Fp), x2d.dtype).at[:M, :F].set(x2d)
    wt = jnp.transpose(w, (0, 2, 1))                                # [L, in, out]
    wt_p = jnp.zeros((NUM_LAYERS, Fp, Fp), w.dtype).at[:, :F, :F].set(wt)
    b_p = jnp.zeros((NUM_LAYERS, 1, Fp), b.dtype).at[:, 0, :F].set(b)

    # Layer-block size: fuse all 20 layers per row tile when the (double-buffered)
    # weight stack is small; otherwise pipeline one layer per grid step.
    weight_stack_bytes = 2 * NUM_LAYERS * Fp * Fp * 4
    LB = NUM_LAYERS if weight_stack_bytes <= _FUSED_WEIGHT_BYTES else 1
    grid = (Mp // TM, NUM_LAYERS // LB)

    # Adaptive scoped-VMEM limit: double-buffered weights/bias/x/out + scratch.
    itemsize = jnp.dtype(x2d.dtype).itemsize
    vmem_need = (2 * LB * Fp * Fp * 4          # weights (double-buffered)
                 + 2 * LB * Fp * 4             # bias    (double-buffered)
                 + 2 * 2 * TM * Fp * itemsize  # x + out (double-buffered)
                 + TM * Fp * 4)                # activation scratch
    vmem_limit = max(32 * 1024 * 1024,
                     min(int(vmem_need * 1.25) + (1 << 20), 60 * 1024 * 1024))

    out_p = pl.pallas_call(
        hit_kernel,
        out_shape=jax.ShapeDtypeStruct((Mp, Fp), x2d.dtype),
        grid_spec=pltpu.PrefetchScalarGridSpec(
            num_scalar_prefetch=0,
            grid=grid,
            in_specs=[
                pl.BlockSpec((TM, Fp), lambda i, l: (i, 0)),
                pl.BlockSpec((LB, Fp, Fp), lambda i, l: (l, 0, 0)),
                pl.BlockSpec((LB, 1, Fp), lambda i, l: (l, 0, 0)),
            ],
            out_specs=pl.BlockSpec((TM, Fp), lambda i, l: (i, 0)),
            scratch_shapes=[pltpu.VMEM((TM, Fp), jnp.float32)],
        ),
        compiler_params=pltpu.CompilerParams(
            dimension_semantics=("parallel", "arbitrary"),
            vmem_limit_bytes=vmem_limit,
        ),
        cost_estimate=pl.CostEstimate(
            flops=2 * NUM_LAYERS * M * F * F,
            transcendentals=0,
            bytes_accessed=4 * (M * F                       # x
                                + NUM_LAYERS * F * F        # weights
                                + NUM_LAYERS * F            # bias
                                + M * F),                   # out
        ),
    )(x_p, wt_p, b_p)

    return out_p[:M, :F].reshape(orig_shape)


def init_params(key, in_features):
    # Deterministic init mimicking torch.nn.Linear default:
    # U(-1/sqrt(fan_in), 1/sqrt(fan_in)) for both W and b.
    bound = 1.0 / (in_features ** 0.5)
    kw, kb = jax.random.split(key)
    w = jax.random.uniform(
        kw, (NUM_LAYERS, in_features, in_features),
        minval=-bound, maxval=bound, dtype=jnp.float32)          # [L, out, in]
    b = jax.random.uniform(
        kb, (NUM_LAYERS, in_features),
        minval=-bound, maxval=bound, dtype=jnp.float32)          # [L, out]
    return w, b


def reference_forward(x2d, w, b):
    y = x2d
    for l in range(NUM_LAYERS):
        y = y @ w[l].T + b[l]
    return y


if __name__ == "__main__":
    # Small shapes consistent with HitModel(in_features=F): x is (B, S, F),
    # each Linear acts on the last (feature) axis.
    B, S, F = 2, 8, 32
    key = jax.random.PRNGKey(0)
    kx, kp = jax.random.split(key)

    x = jax.random.normal(kx, (B, S, F), dtype=jnp.float32)
    w, b = init_params(kp, F)

    out = hit_model_forward(x, w, b)
    out = jax.block_until_ready(out)

    ref = reference_forward(x.reshape(B * S, F), w, b).reshape(B, S, F)
    assert jnp.allclose(out, ref, atol=1e-4, rtol=1e-4), "mismatch vs reference"

    # TODO(synk): MissHitScatter / GatherRouter are never used in forward(); not implemented.
    print("KERNEL_OK")
</pallas_src>

<mosaic_0001>
module attributes {stable_mosaic.version = 11 : i64} {
  func.func @hit_kernel(%arg0: i32, %arg1: i32, %arg2: memref<16x128xf32, #tpu.memory_space<vmem>>, %arg3: memref<20x128x128xf32, #tpu.memory_space<vmem>>, %arg4: memref<20x1x128xf32, #tpu.memory_space<vmem>>, %arg5: memref<16x128xf32, #tpu.memory_space<vmem>>, %arg6: memref<16x128xf32, #tpu.memory_space<vmem>>) attributes {dimension_semantics = [#tpu.dimension_semantics<parallel>, #tpu.dimension_semantics<arbitrary>], iteration_bounds = array<i64: 1, 1>, scalar_prefetch = 0 : i64, scratch_operands = 1 : i64, tpu.core_type = #tpu.core_type<tc>, window_params = [{transform_indices = @transform_0, window_bounds = array<i64: 16, 128>}, {transform_indices = @transform_1, window_bounds = array<i64: 20, 128, 128>}, {transform_indices = @transform_2, window_bounds = array<i64: 20, 1, 128>}, {transform_indices = @transform_3, window_bounds = array<i64: 16, 128>}]} {
    %c0_i32 = arith.constant 0 : i32
    %0 = arith.cmpi eq, %arg1, %c0_i32 : i32
    %1 = arith.extui %0 : i1 to i32
    %c0_i32_0 = arith.constant 0 : i32
    %2 = arith.cmpi ne, %1, %c0_i32_0 : i32
    scf.if %2 {
      %c0_126 = arith.constant 0 : index
      %c0_127 = arith.constant 0 : index
      %148 = vector.load %arg2[%c0_126, %c0_127] : memref<16x128xf32, #tpu.memory_space<vmem>>, vector<16x128xf32>
      %c0_128 = arith.constant 0 : index
      %c0_129 = arith.constant 0 : index
      %149 = vector.load %arg6[%c0_128, %c0_129] : memref<16x128xf32, #tpu.memory_space<vmem>>, vector<16x128xf32>
      tpu.vector_store %arg6[%c0_128, %c0_129], %148 {strides = array<i32>} : memref<16x128xf32, #tpu.memory_space<vmem>>, vector<16x128xf32>,
    } else {
    }
    %c0 = arith.constant 0 : index
    %c0_1 = arith.constant 0 : index
    %3 = vector.load %arg6[%c0, %c0_1] : memref<16x128xf32, #tpu.memory_space<vmem>>, vector<16x128xf32>
    %c0_2 = arith.constant 0 : index
    %c0_3 = arith.constant 0 : index
    %c0_4 = arith.constant 0 : index
    %4 = vector.load %arg3[%c0_2, %c0_3, %c0_4] : memref<20x128x128xf32, #tpu.memory_space<vmem>>, vector<1x128x128xf32>
    %5 = vector.shape_cast %4 : vector<1x128x128xf32> to vector<128x128xf32>
    %cst = arith.constant dense<0.000000e+00> : vector<16x128xf32>
    %6 = tpu.matmul %3, %5, %cst {dimension_numbers = #tpu.dot_dimension_numbers<[1], [0], [0], [1], [0, 0, 1, 1], [], []>} : vector<16x128xf32>, vector<128x128xf32>, vector<16x128xf32> -> vector<16x128xf32>
    %c0_5 = arith.constant 0 : index
    %c0_6 = arith.constant 0 : index
    %c0_7 = arith.constant 0 : index
    %7 = vector.load %arg4[%c0_5, %c0_6, %c0_7] : memref<20x1x128xf32, #tpu.memory_space<vmem>>, vector<1x1x128xf32>
    %8 = vector.shape_cast %7 : vector<1x1x128xf32> to vector<1x128xf32>
    %9 = vector.broadcast %8 : vector<1x128xf32> to vector<16x128xf32>
    %10 = arith.addf %6, %9 : vector<16x128xf32>
    %c1 = arith.constant 1 : index
    %c0_8 = arith.constant 0 : index
    %c0_9 = arith.constant 0 : index
    %11 = vector.load %arg3[%c1, %c0_8, %c0_9] : memref<20x128x128xf32, #tpu.memory_space<vmem>>, vector<1x128x128xf32>
    %12 = vector.shape_cast %11 : vector<1x128x128xf32> to vector<128x128xf32>
    %cst_10 = arith.constant dense<0.000000e+00> : vector<16x128xf32>
    %13 = tpu.matmul %10, %12, %cst_10 {dimension_numbers = #tpu.dot_dimension_numbers<[1], [0], [0], [1], [0, 0, 1, 1], [], []>} : vector<16x128xf32>, vector<128x128xf32>, vector<16x128xf32> -> vector<16x128xf32>
    %c1_11 = arith.constant 1 : index
    %c0_12 = arith.constant 0 : index
    %c0_13 = arith.constant 0 : index
    %14 = vector.load %arg4[%c1_11, %c0_12, %c0_13] : memref<20x1x128xf32, #tpu.memory_space<vmem>>, vector<1x1x128xf32>
    %15 = vector.shape_cast %14 : vector<1x1x128xf32> to vector<1x128xf32>
    %16 = vector.broadcast %15 : vector<1x128xf32> to vector<16x128xf32>
    %17 = arith.addf %13, %16 : vector<16x128xf32>
    %c2 = arith.constant 2 : index
    %c0_14 = arith.constant 0 : index
    %c0_15 = arith.constant 0 : index
    %18 = vector.load %arg3[%c2, %c0_14, %c0_15] : memref<20x128x128xf32, #tpu.memory_space<vmem>>, vector<1x128x128xf32>
    %19 = vector.shape_cast %18 : vector<1x128x128xf32> to vector<128x128xf32>
    %cst_16 = arith.constant dense<0.000000e+00> : vector<16x128xf32>
    %20 = tpu.matmul %17, %19, %cst_16 {dimension_numbers = #tpu.dot_dimension_numbers<[1], [0], [0], [1], [0, 0, 1, 1], [], []>} : vector<16x128xf32>, vector<128x128xf32>, vector<16x128xf32> -> vector<16x128xf32>
    %c2_17 = arith.constant 2 : index
    %c0_18 = arith.constant 0 : index
    %c0_19 = arith.constant 0 : index
    %21 = vector.load %arg4[%c2_17, %c0_18, %c0_19] : memref<20x1x128xf32, #tpu.memory_space<vmem>>, vector<1x1x128xf32>
    %22 = vector.shape_cast %21 : vector<1x1x128xf32> to vector<1x128xf32>
    %23 = vector.broadcast %22 : vector<1x128xf32> to vector<16x128xf32>
    %24 = arith.addf %20, %23 : vector<16x128xf32>
    %c3 = arith.constant 3 : index
    %c0_20 = arith.constant 0 : index
    %c0_21 = arith.constant 0 : index
    %25 = vector.load %arg3[%c3, %c0_20, %c0_21] : memref<20x128x128xf32, #tpu.memory_space<vmem>>, vector<1x128x128xf32>
    %26 = vector.shape_cast %25 : vector<1x128x128xf32> to vector<128x128xf32>
    %cst_22 = arith.constant dense<0.000000e+00> : vector<16x128xf32>
    %27 = tpu.matmul %24, %26, %cst_22 {dimension_numbers = #tpu.dot_dimension_numbers<[1], [0], [0], [1], [0, 0, 1, 1], [], []>} : vector<16x128xf32>, vector<128x128xf32>, vector<16x128xf32> -> vector<16x128xf32>
    %c3_23 = arith.constant 3 : index
    %c0_24 = arith.constant 0 : index
    %c0_25 = arith.constant 0 : index
    %28 = vector.load %arg4[%c3_23, %c0_24, %c0_25] : memref<20x1x128xf32, #tpu.memory_space<vmem>>, vector<1x1x128xf32>
    %29 = vector.shape_cast %28 : vector<1x1x128xf32> to vector<1x128xf32>
    %30 = vector.broadcast %29 : vector<1x128xf32> to vector<16x128xf32>
    %31 = arith.addf %27, %30 : vector<16x128xf32>
    %c4 = arith.constant 4 : index
    %c0_26 = arith.constant 0 : index
    %c0_27 = arith.constant 0 : index
    %32 = vector.load %arg3[%c4, %c0_26, %c0_27] : memref<20x128x128xf32, #tpu.memory_space<vmem>>, vector<1x128x128xf32>
    %33 = vector.shape_cast %32 : vector<1x128x128xf32> to vector<128x128xf32>
    %cst_28 = arith.constant dense<0.000000e+00> : vector<16x128xf32>
    %34 = tpu.matmul %31, %33, %cst_28 {dimension_numbers = #tpu.dot_dimension_numbers<[1], [0], [0], [1], [0, 0, 1, 1], [], []>} : vector<16x128xf32>, vector<128x128xf32>, vector<16x128xf32> -> vector<16x128xf32>
    %c4_29 = arith.constant 4 : index
    %c0_30 = arith.constant 0 : index
    %c0_31 = arith.constant 0 : index
    %35 = vector.load %arg4[%c4_29, %c0_30, %c0_31] : memref<20x1x128xf32, #tpu.memory_space<vmem>>, vector<1x1x128xf32>
    %36 = vector.shape_cast %35 : vector<1x1x128xf32> to vector<1x128xf32>
    %37 = vector.broadcast %36 : vector<1x128xf32> to vector<16x128xf32>
    %38 = arith.addf %34, %37 : vector<16x128xf32>
    %c5 = arith.constant 5 : index
    %c0_32 = arith.constant 0 : index
    %c0_33 = arith.constant 0 : index
    %39 = vector.load %arg3[%c5, %c0_32, %c0_33] : memref<20x128x128xf32, #tpu.memory_space<vmem>>, vector<1x128x128xf32>
    %40 = vector.shape_cast %39 : vector<1x128x128xf32> to vector<128x128xf32>
    %cst_34 = arith.constant dense<0.000000e+00> : vector<16x128xf32>
    %41 = tpu.matmul %38, %40, %cst_34 {dimension_numbers = #tpu.dot_dimension_numbers<[1], [0], [0], [1], [0, 0, 1, 1], [], []>} : vector<16x128xf32>, vector<128x128xf32>, vector<16x128xf32> -> vector<16x128xf32>
    %c5_35 = arith.constant 5 : index
    %c0_36 = arith.constant 0 : index
    %c0_37 = arith.constant 0 : index
    %42 = vector.load %arg4[%c5_35, %c0_36, %c0_37] : memref<20x1x128xf32, #tpu.memory_space<vmem>>, vector<1x1x128xf32>
    %43 = vector.shape_cast %42 : vector<1x1x128xf32> to vector<1x128xf32>
    %44 = vector.broadcast %43 : vector<1x128xf32> to vector<16x128xf32>
    %45 = arith.addf %41, %44 : vector<16x128xf32>
    %c6 = arith.constant 6 : index
    %c0_38 = arith.constant 0 : index
    %c0_39 = arith.constant 0 : index
    %46 = vector.load %arg3[%c6, %c0_38, %c0_39] : memref<20x128x128xf32, #tpu.memory_space<vmem>>, vector<1x128x128xf32>
    %47 = vector.shape_cast %46 : vector<1x128x128xf32> to vector<128x128xf32>
    %cst_40 = arith.constant dense<0.000000e+00> : vector<16x128xf32>
    %48 = tpu.matmul %45, %47, %cst_40 {dimension_numbers = #tpu.dot_dimension_numbers<[1], [0], [0], [1], [0, 0, 1, 1], [], []>} : vector<16x128xf32>, vector<128x128xf32>, vector<16x128xf32> -> vector<16x128xf32>
    %c6_41 = arith.constant 6 : index
    %c0_42 = arith.constant 0 : index
    %c0_43 = arith.constant 0 : index
    %49 = vector.load %arg4[%c6_41, %c0_42, %c0_43] : memref<20x1x128xf32, #tpu.memory_space<vmem>>, vector<1x1x128xf32>
    %50 = vector.shape_cast %49 : vector<1x1x128xf32> to vector<1x128xf32>
    %51 = vector.broadcast %50 : vector<1x128xf32> to vector<16x128xf32>
    %52 = arith.addf %48, %51 : vector<16x128xf32>
    %c7 = arith.constant 7 : index
    %c0_44 = arith.constant 0 : index
    %c0_45 = arith.constant 0 : index
    %53 = vector.load %arg3[%c7, %c0_44, %c0_45] : memref<20x128x128xf32, #tpu.memory_space<vmem>>, vector<1x128x128xf32>
    %54 = vector.shape_cast %53 : vector<1x128x128xf32> to vector<128x128xf32>
    %cst_46 = arith.constant dense<0.000000e+00> : vector<16x128xf32>
    %55 = tpu.matmul %52, %54, %cst_46 {dimension_numbers = #tpu.dot_dimension_numbers<[1], [0], [0], [1], [0, 0, 1, 1], [], []>} : vector<16x128xf32>, vector<128x128xf32>, vector<16x128xf32> -> vector<16x128xf32>
    %c7_47 = arith.constant 7 : index
    %c0_48 = arith.constant 0 : index
    %c0_49 = arith.constant 0 : index
    %56 = vector.load %arg4[%c7_47, %c0_48, %c0_49] : memref<20x1x128xf32, #tpu.memory_space<vmem>>, vector<1x1x128xf32>
    %57 = vector.shape_cast %56 : vector<1x1x128xf32> to vector<1x128xf32>
    %58 = vector.broadcast %57 : vector<1x128xf32> to vector<16x128xf32>
    %59 = arith.addf %55, %58 : vector<16x128xf32>
    %c8 = arith.constant 8 : index
    %c0_50 = arith.constant 0 : index
    %c0_51 = arith.constant 0 : index
    %60 = vector.load %arg3[%c8, %c0_50, %c0_51] : memref<20x128x128xf32, #tpu.memory_space<vmem>>, vector<1x128x128xf32>
    %61 = vector.shape_cast %60 : vector<1x128x128xf32> to vector<128x128xf32>
    %cst_52 = arith.constant dense<0.000000e+00> : vector<16x128xf32>
    %62 = tpu.matmul %59, %61, %cst_52 {dimension_numbers = #tpu.dot_dimension_numbers<[1], [0], [0], [1], [0, 0, 1, 1], [], []>} : vector<16x128xf32>, vector<128x128xf32>, vector<16x128xf32> -> vector<16x128xf32>
    %c8_53 = arith.constant 8 : index
    %c0_54 = arith.constant 0 : index
    %c0_55 = arith.constant 0 : index
    %63 = vector.load %arg4[%c8_53, %c0_54, %c0_55] : memref<20x1x128xf32, #tpu.memory_space<vmem>>, vector<1x1x128xf32>
    %64 = vector.shape_cast %63 : vector<1x1x128xf32> to vector<1x128xf32>
    %65 = vector.broadcast %64 : vector<1x128xf32> to vector<16x128xf32>
    %66 = arith.addf %62, %65 : vector<16x128xf32>
    %c9 = arith.constant 9 : index
    %c0_56 = arith.constant 0 : index
    %c0_57 = arith.constant 0 : index
    %67 = vector.load %arg3[%c9, %c0_56, %c0_57] : memref<20x128x128xf32, #tpu.memory_space<vmem>>, vector<1x128x128xf32>
    %68 = vector.shape_cast %67 : vector<1x128x128xf32> to vector<128x128xf32>
    %cst_58 = arith.constant dense<0.000000e+00> : vector<16x128xf32>
    %69 = tpu.matmul %66, %68, %cst_58 {dimension_numbers = #tpu.dot_dimension_numbers<[1], [0], [0], [1], [0, 0, 1, 1], [], []>} : vector<16x128xf32>, vector<128x128xf32>, vector<16x128xf32> -> vector<16x128xf32>
    %c9_59 = arith.constant 9 : index
    %c0_60 = arith.constant 0 : index
    %c0_61 = arith.constant 0 : index
    %70 = vector.load %arg4[%c9_59, %c0_60, %c0_61] : memref<20x1x128xf32, #tpu.memory_space<vmem>>, vector<1x1x128xf32>
    %71 = vector.shape_cast %70 : vector<1x1x128xf32> to vector<1x128xf32>
    %72 = vector.broadcast %71 : vector<1x128xf32> to vector<16x128xf32>
    %73 = arith.addf %69, %72 : vector<16x128xf32>
    %c10 = arith.constant 10 : index
    %c0_62 = arith.constant 0 : index
    %c0_63 = arith.constant 0 : index
    %74 = vector.load %arg3[%c10, %c0_62, %c0_63] : memref<20x128x128xf32, #tpu.memory_space<vmem>>, vector<1x128x128xf32>
    %75 = vector.shape_cast %74 : vector<1x128x128xf32> to vector<128x128xf32>
    %cst_64 = arith.constant dense<0.000000e+00> : vector<16x128xf32>
    %76 = tpu.matmul %73, %75, %cst_64 {dimension_numbers = #tpu.dot_dimension_numbers<[1], [0], [0], [1], [0, 0, 1, 1], [], []>} : vector<16x128xf32>, vector<128x128xf32>, vector<16x128xf32> -> vector<16x128xf32>
    %c10_65 = arith.constant 10 : index
    %c0_66 = arith.constant 0 : index
    %c0_67 = arith.constant 0 : index
    %77 = vector.load %arg4[%c10_65, %c0_66, %c0_67] : memref<20x1x128xf32, #tpu.memory_space<vmem>>, vector<1x1x128xf32>
    %78 = vector.shape_cast %77 : vector<1x1x128xf32> to vector<1x128xf32>
    %79 = vector.broadcast %78 : vector<1x128xf32> to vector<16x128xf32>
    %80 = arith.addf %76, %79 : vector<16x128xf32>
    %c11 = arith.constant 11 : index
    %c0_68 = arith.constant 0 : index
    %c0_69 = arith.constant 0 : index
    %81 = vector.load %arg3[%c11, %c0_68, %c0_69] : memref<20x128x128xf32, #tpu.memory_space<vmem>>, vector<1x128x128xf32>
    %82 = vector.shape_cast %81 : vector<1x128x128xf32> to vector<128x128xf32>
    %cst_70 = arith.constant dense<0.000000e+00> : vector<16x128xf32>
    %83 = tpu.matmul %80, %82, %cst_70 {dimension_numbers = #tpu.dot_dimension_numbers<[1], [0], [0], [1], [0, 0, 1, 1], [], []>} : vector<16x128xf32>, vector<128x128xf32>, vector<16x128xf32> -> vector<16x128xf32>
    %c11_71 = arith.constant 11 : index
    %c0_72 = arith.constant 0 : index
    %c0_73 = arith.constant 0 : index
    %84 = vector.load %arg4[%c11_71, %c0_72, %c0_73] : memref<20x1x128xf32, #tpu.memory_space<vmem>>, vector<1x1x128xf32>
    %85 = vector.shape_cast %84 : vector<1x1x128xf32> to vector<1x128xf32>
    %86 = vector.broadcast %85 : vector<1x128xf32> to vector<16x128xf32>
    %87 = arith.addf %83, %86 : vector<16x128xf32>
    %c12 = arith.constant 12 : index
    %c0_74 = arith.constant 0 : index
    %c0_75 = arith.constant 0 : index
    %88 = vector.load %arg3[%c12, %c0_74, %c0_75] : memref<20x128x128xf32, #tpu.memory_space<vmem>>, vector<1x128x128xf32>
    %89 = vector.shape_cast %88 : vector<1x128x128xf32> to vector<128x128xf32>
    %cst_76 = arith.constant dense<0.000000e+00> : vector<16x128xf32>
    %90 = tpu.matmul %87, %89, %cst_76 {dimension_numbers = #tpu.dot_dimension_numbers<[1], [0], [0], [1], [0, 0, 1, 1], [], []>} : vector<16x128xf32>, vector<128x128xf32>, vector<16x128xf32> -> vector<16x128xf32>
    %c12_77 = arith.constant 12 : index
    %c0_78 = arith.constant 0 : index
    %c0_79 = arith.constant 0 : index
    %91 = vector.load %arg4[%c12_77, %c0_78, %c0_79] : memref<20x1x128xf32, #tpu.memory_space<vmem>>, vector<1x1x128xf32>
    %92 = vector.shape_cast %91 : vector<1x1x128xf32> to vector<1x128xf32>
    %93 = vector.broadcast %92 : vector<1x128xf32> to vector<16x128xf32>
    %94 = arith.addf %90, %93 : vector<16x128xf32>
    %c13 = arith.constant 13 : index
    %c0_80 = arith.constant 0 : index
    %c0_81 = arith.constant 0 : index
    %95 = vector.load %arg3[%c13, %c0_80, %c0_81] : memref<20x128x128xf32, #tpu.memory_space<vmem>>, vector<1x128x128xf32>
    %96 = vector.shape_cast %95 : vector<1x128x128xf32> to vector<128x128xf32>
    %cst_82 = arith.constant dense<0.000000e+00> : vector<16x128xf32>
    %97 = tpu.matmul %94, %96, %cst_82 {dimension_numbers = #tpu.dot_dimension_numbers<[1], [0], [0], [1], [0, 0, 1, 1], [], []>} : vector<16x128xf32>, vector<128x128xf32>, vector<16x128xf32> -> vector<16x128xf32>
    %c13_83 = arith.constant 13 : index
    %c0_84 = arith.constant 0 : index
    %c0_85 = arith.constant 0 : index
    %98 = vector.load %arg4[%c13_83, %c0_84, %c0_85] : memref<20x1x128xf32, #tpu.memory_space<vmem>>, vector<1x1x128xf32>
    %99 = vector.shape_cast %98 : vector<1x1x128xf32> to vector<1x128xf32>
    %100 = vector.broadcast %99 : vector<1x128xf32> to vector<16x128xf32>
    %101 = arith.addf %97, %100 : vector<16x128xf32>
    %c14 = arith.constant 14 : index
    %c0_86 = arith.constant 0 : index
    %c0_87 = arith.constant 0 : index
    %102 = vector.load %arg3[%c14, %c0_86, %c0_87] : memref<20x128x128xf32, #tpu.memory_space<vmem>>, vector<1x128x128xf32>
    %103 = vector.shape_cast %102 : vector<1x128x128xf32> to vector<128x128xf32>
    %cst_88 = arith.constant dense<0.000000e+00> : vector<16x128xf32>
    %104 = tpu.matmul %101, %103, %cst_88 {dimension_numbers = #tpu.dot_dimension_numbers<[1], [0], [0], [1], [0, 0, 1, 1], [], []>} : vector<16x128xf32>, vector<128x128xf32>, vector<16x128xf32> -> vector<16x128xf32>
    %c14_89 = arith.constant 14 : index
    %c0_90 = arith.constant 0 : index
    %c0_91 = arith.constant 0 : index
    %105 = vector.load %arg4[%c14_89, %c0_90, %c0_91] : memref<20x1x128xf32, #tpu.memory_space<vmem>>, vector<1x1x128xf32>
    %106 = vector.shape_cast %105 : vector<1x1x128xf32> to vector<1x128xf32>
    %107 = vector.broadcast %106 : vector<1x128xf32> to vector<16x128xf32>
    %108 = arith.addf %104, %107 : vector<16x128xf32>
    %c15 = arith.constant 15 : index
    %c0_92 = arith.constant 0 : index
    %c0_93 = arith.constant 0 : index
    %109 = vector.load %arg3[%c15, %c0_92, %c0_93] : memref<20x128x128xf32, #tpu.memory_space<vmem>>, vector<1x128x128xf32>
    %110 = vector.shape_cast %109 : vector<1x128x128xf32> to vector<128x128xf32>
    %cst_94 = arith.constant dense<0.000000e+00> : vector<16x128xf32>
    %111 = tpu.matmul %108, %110, %cst_94 {dimension_numbers = #tpu.dot_dimension_numbers<[1], [0], [0], [1], [0, 0, 1, 1], [], []>} : vector<16x128xf32>, vector<128x128xf32>, vector<16x128xf32> -> vector<16x128xf32>
    %c15_95 = arith.constant 15 : index
    %c0_96 = arith.constant 0 : index
    %c0_97 = arith.constant 0 : index
    %112 = vector.load %arg4[%c15_95, %c0_96, %c0_97] : memref<20x1x128xf32, #tpu.memory_space<vmem>>, vector<1x1x128xf32>
    %113 = vector.shape_cast %112 : vector<1x1x128xf32> to vector<1x128xf32>
    %114 = vector.broadcast %113 : vector<1x128xf32> to vector<16x128xf32>
    %115 = arith.addf %111, %114 : vector<16x128xf32>
    %c16 = arith.constant 16 : index
    %c0_98 = arith.constant 0 : index
    %c0_99 = arith.constant 0 : index
    %116 = vector.load %arg3[%c16, %c0_98, %c0_99] : memref<20x128x128xf32, #tpu.memory_space<vmem>>, vector<1x128x128xf32>
    %117 = vector.shape_cast %116 : vector<1x128x128xf32> to vector<128x128xf32>
    %cst_100 = arith.constant dense<0.000000e+00> : vector<16x128xf32>
    %118 = tpu.matmul %115, %117, %cst_100 {dimension_numbers = #tpu.dot_dimension_numbers<[1], [0], [0], [1], [0, 0, 1, 1], [], []>} : vector<16x128xf32>, vector<128x128xf32>, vector<16x128xf32> -> vector<16x128xf32>
    %c16_101 = arith.constant 16 : index
    %c0_102 = arith.constant 0 : index
    %c0_103 = arith.constant 0 : index
    %119 = vector.load %arg4[%c16_101, %c0_102, %c0_103] : memref<20x1x128xf32, #tpu.memory_space<vmem>>, vector<1x1x128xf32>
    %120 = vector.shape_cast %119 : vector<1x1x128xf32> to vector<1x128xf32>
    %121 = vector.broadcast %120 : vector<1x128xf32> to vector<16x128xf32>
    %122 = arith.addf %118, %121 : vector<16x128xf32>
    %c17 = arith.constant 17 : index
    %c0_104 = arith.constant 0 : index
    %c0_105 = arith.constant 0 : index
    %123 = vector.load %arg3[%c17, %c0_104, %c0_105] : memref<20x128x128xf32, #tpu.memory_space<vmem>>, vector<1x128x128xf32>
    %124 = vector.shape_cast %123 : vector<1x128x128xf32> to vector<128x128xf32>
    %cst_106 = arith.constant dense<0.000000e+00> : vector<16x128xf32>
    %125 = tpu.matmul %122, %124, %cst_106 {dimension_numbers = #tpu.dot_dimension_numbers<[1], [0], [0], [1], [0, 0, 1, 1], [], []>} : vector<16x128xf32>, vector<128x128xf32>, vector<16x128xf32> -> vector<16x128xf32>
    %c17_107 = arith.constant 17 : index
    %c0_108 = arith.constant 0 : index
    %c0_109 = arith.constant 0 : index
    %126 = vector.load %arg4[%c17_107, %c0_108, %c0_109] : memref<20x1x128xf32, #tpu.memory_space<vmem>>, vector<1x1x128xf32>
    %127 = vector.shape_cast %126 : vector<1x1x128xf32> to vector<1x128xf32>
    %128 = vector.broadcast %127 : vector<1x128xf32> to vector<16x128xf32>
    %129 = arith.addf %125, %128 : vector<16x128xf32>
    %c18 = arith.constant 18 : index
    %c0_110 = arith.constant 0 : index
    %c0_111 = arith.constant 0 : index
    %130 = vector.load %arg3[%c18, %c0_110, %c0_111] : memref<20x128x128xf32, #tpu.memory_space<vmem>>, vector<1x128x128xf32>
    %131 = vector.shape_cast %130 : vector<1x128x128xf32> to vector<128x128xf32>
    %cst_112 = arith.constant dense<0.000000e+00> : vector<16x128xf32>
    %132 = tpu.matmul %129, %131, %cst_112 {dimension_numbers = #tpu.dot_dimension_numbers<[1], [0], [0], [1], [0, 0, 1, 1], [], []>} : vector<16x128xf32>, vector<128x128xf32>, vector<16x128xf32> -> vector<16x128xf32>
    %c18_113 = arith.constant 18 : index
    %c0_114 = arith.constant 0 : index
    %c0_115 = arith.constant 0 : index
    %133 = vector.load %arg4[%c18_113, %c0_114, %c0_115] : memref<20x1x128xf32, #tpu.memory_space<vmem>>, vector<1x1x128xf32>
    %134 = vector.shape_cast %133 : vector<1x1x128xf32> to vector<1x128xf32>
    %135 = vector.broadcast %134 : vector<1x128xf32> to vector<16x128xf32>
    %136 = arith.addf %132, %135 : vector<16x128xf32>
    %c19 = arith.constant 19 : index
    %c0_116 = arith.constant 0 : index
    %c0_117 = arith.constant 0 : index
    %137 = vector.load %arg3[%c19, %c0_116, %c0_117] : memref<20x128x128xf32, #tpu.memory_space<vmem>>, vector<1x128x128xf32>
    %138 = vector.shape_cast %137 : vector<1x128x128xf32> to vector<128x128xf32>
    %cst_118 = arith.constant dense<0.000000e+00> : vector<16x128xf32>
    %139 = tpu.matmul %136, %138, %cst_118 {dimension_numbers = #tpu.dot_dimension_numbers<[1], [0], [0], [1], [0, 0, 1, 1], [], []>} : vector<16x128xf32>, vector<128x128xf32>, vector<16x128xf32> -> vector<16x128xf32>
    %c19_119 = arith.constant 19 : index
    %c0_120 = arith.constant 0 : index
    %c0_121 = arith.constant 0 : index
    %140 = vector.load %arg4[%c19_119, %c0_120, %c0_121] : memref<20x1x128xf32, #tpu.memory_space<vmem>>, vector<1x1x128xf32>
    %141 = vector.shape_cast %140 : vector<1x1x128xf32> to vector<1x128xf32>
    %142 = vector.broadcast %141 : vector<1x128xf32> to vector<16x128xf32>
    %143 = arith.addf %139, %142 : vector<16x128xf32>
    %c0_122 = arith.constant 0 : index
    %c0_123 = arith.constant 0 : index
    %144 = vector.load %arg6[%c0_122, %c0_123] : memref<16x128xf32, #tpu.memory_space<vmem>>, vector<16x128xf32>
    tpu.vector_store %arg6[%c0_122, %c0_123], %143 {strides = array<i32>} : memref<16x128xf32, #tpu.memory_space<vmem>>, vector<16x128xf32>,
    %c0_i32_124 = arith.constant 0 : i32
    %145 = arith.cmpi eq, %arg1, %c0_i32_124 : i32
    %146 = arith.extui %145 : i1 to i32
    %c0_i32_125 = arith.constant 0 : i32
    %147 = arith.cmpi ne, %146, %c0_i32_125 : i32
    scf.if %147 {
      %c0_126 = arith.constant 0 : index
      %c0_127 = arith.constant 0 : index
      %148 = vector.load %arg5[%c0_126, %c0_127] : memref<16x128xf32, #tpu.memory_space<vmem>>, vector<16x128xf32>
      tpu.vector_store %arg5[%c0_126, %c0_127], %143 {strides = array<i32>} : memref<16x128xf32, #tpu.memory_space<vmem>>, vector<16x128xf32>,
    } else {
    }
    return
  }
  func.func @transform_0(%arg0: i32, %arg1: i32) -> (i32, i32) {
    %c0_i32 = arith.constant 0 : i32
    %c0_i32_0 = arith.constant 0 : i32
    return %arg0, %c0_i32 : i32, i32
  }
  func.func @transform_1(%arg0: i32, %arg1: i32) -> (i32, i32, i32) {
    %c0_i32 = arith.constant 0 : i32
    %c0_i32_0 = arith.constant 0 : i32
    %c0_i32_1 = arith.constant 0 : i32
    return %arg1, %c0_i32, %c0_i32_0 : i32, i32, i32
  }
  func.func @transform_2(%arg0: i32, %arg1: i32) -> (i32, i32, i32) {
    %c0_i32 = arith.constant 0 : i32
    %c0_i32_0 = arith.constant 0 : i32
    %c0_i32_1 = arith.constant 0 : i32
    return %arg1, %c0_i32, %c0_i32_0 : i32, i32, i32
  }
  func.func @transform_3(%arg0: i32, %arg1: i32) -> (i32, i32) {
    %c0_i32 = arith.constant 0 : i32
    %c0_i32_0 = arith.constant 0 : i32
    return %arg0, %c0_i32 : i32, i32
  }
}

</mosaic_0001>

<llo_original>
// kernel: hit_model_forward.1
$region0: #{hit_model_forward.1}
  #allocation0 [shape = 'u32[]', space=smem, size = 0x4, offset = 0x4, fixed_abs, tag = 'smem constant byte address 0x4 - core index']
  #allocation1 [shape = 'u32[144,128]{1,0:T(1,128)}', space=vmem, size = 0x12000, scoped, tag = 'internal scratch']
  #allocation2 [shape = 'f32[16,128]{1,0:T(8,128)}', space=vmem, size = 0x2000, scoped, tag = 'scratch operand']
  %s0 = inlined_call_operand.vmem [shape: f32[16,128], index: 0, kind: input, shape index: {}]
  %s1 = inlined_call_operand.vmem [shape: f32[20,128,128], index: 1, kind: input, shape index: {}]
  %s2 = inlined_call_operand.vmem [shape: f32[20,1,128], index: 2, kind: input, shape index: {}]
  %s3 = inlined_call_operand.vmem [shape: f32[16,128], index: 3, kind: output, shape index: {}]
  %s4 = sld [smem:[#allocation0]]
  $region30: #{hit_model_forward.1} parent=0
    _
  %s6 = ssub.s32 1, %s4
  %s7 = scalar_select 0, %s6, %s4
  // Predicated region
  $region2: #{hit_model_forward.1} parent=0 // pred_check
    _
  $region3: #{hit_model_forward.1} parent=0 // pred_check_branch
    %9 = sbr.rel (0) target = $region5
  $region4: #{hit_model_forward.1} parent=0 // pred_region
    _
  $region5: #{hit_model_forward.1} parent=0 // pred_fallthru
    _
  // Predicated region
  $region6: #{hit_model_forward.1} parent=0 // pred_check
    _
  $region7: #{hit_model_forward.1} parent=0 // pred_check_branch
    %11 = sbr.rel (0) target = $region9
  $region8: #{hit_model_forward.1} parent=0 // pred_region
    _
  $region9: #{hit_model_forward.1} parent=0 // pred_fallthru
    _
  // Predicated region
  $region10: #{hit_model_forward.1} parent=0 // pred_check
    _
  $region11: #{hit_model_forward.1} parent=0 // pred_check_branch
    %13 = sbr.rel (0) target = $region13
  $region12: #{hit_model_forward.1} parent=0 // pred_region
    _
  $region13: #{hit_model_forward.1} parent=0 // pred_fallthru
    _
  %p14 = scmp.eq.s32.totalorder 0, 0
  // Predicated region
  $region14: #{hit_model_forward.1} parent=0 // pred_check
    %p15 = pneg %p14
  $region15: #{hit_model_forward.1} parent=0 // pred_check_branch
    %17 = sbr.rel (%p15) target = $region17
  $region16: #{hit_model_forward.1} parent=0 // pred_region
    %v18 = vld [vmem:[%s0] sm:$0xff]
    %v19 = vld [vmem:[%s0 + $0x8] sm:$0xff]
    %20 = vst [vmem:[#allocation2] sm:$0xff] %v18
    %21 = vst [vmem:[#allocation2 + $0x8] sm:$0xff] %v19
  $region17: #{hit_model_forward.1} parent=0 // pred_fallthru
    _
  %v22 = vld [vmem:[#allocation2] sm:$0xff]
  %v23 = vld [vmem:[#allocation2 + $0x8] sm:$0xff]
  %v24 = vld [vmem:[%s1] sm:$0xff]
  %v25 = vld [vmem:[%s1 + $0x8] sm:$0xff]
  %v26 = vld [vmem:[%s1 + $0x10] sm:$0xff]
  %v27 = vld [vmem:[%s1 + $0x18] sm:$0xff]
  %v28 = vld [vmem:[%s1 + $0x20] sm:$0xff]
  %v29 = vld [vmem:[%s1 + $0x28] sm:$0xff]
  %v30 = vld [vmem:[%s1 + $0x30] sm:$0xff]
  %v31 = vld [vmem:[%s1 + $0x38] sm:$0xff]
  %v32 = vld [vmem:[%s1 + $0x40] sm:$0xff]
  %v33 = vld [vmem:[%s1 + $0x48] sm:$0xff]
  %v34 = vld [vmem:[%s1 + $0x50] sm:$0xff]
  %v35 = vld [vmem:[%s1 + $0x58] sm:$0xff]
  %v36 = vld [vmem:[%s1 + $0x60] sm:$0xff]
  %v37 = vld [vmem:[%s1 + $0x68] sm:$0xff]
  %v38 = vld [vmem:[%s1 + $0x70] sm:$0xff]
  %v39 = vld [vmem:[%s1 + $0x78] sm:$0xff]
  %v40 = vld [vmem:[%s2] sm:$0x1]
  %v42 = vlaneseq
  %v43 = vshrl.u32 %v42, 7
  %v44 = vsub.s32 0, %v43
  %v45 = vrot.slane %v40, %v44
  %47 = vmatprep.subr.mxu0 0.0
  %48 = vmatpush1.msra.mxu0 %v24
  %49 = vmatprep.subr.mxu0 0.0
  %50 = vmatpush1.msra.mxu0 %v25
  %51 = vmatprep.subr.mxu0 0.0
  %52 = vmatpush1.msra.mxu0 %v26
  %53 = vmatprep.subr.mxu0 0.0
  %54 = vmatpush1.msra.mxu0 %v27
  %55 = vmatprep.subr.mxu0 0.0
  %56 = vmatpush1.msra.mxu0 %v28
  %57 = vmatprep.subr.mxu0 0.0
  %58 = vmatpush1.msra.mxu0 %v29
  %59 = vmatprep.subr.mxu0 0.0
  %60 = vmatpush1.msra.mxu0 %v30
  %61 = vmatprep.subr.mxu0 0.0
  %62 = vmatpush1.msra.mxu0 %v31
  %63 = vmatprep.subr.mxu0 0.0
  %64 = vmatpush1.msra.mxu0 %v32
  %65 = vmatprep.subr.mxu0 0.0
  %66 = vmatpush1.msra.mxu0 %v33
  %67 = vmatprep.subr.mxu0 0.0
  %68 = vmatpush1.msra.mxu0 %v34
  %69 = vmatprep.subr.mxu0 0.0
  %70 = vmatpush1.msra.mxu0 %v35
  %71 = vmatprep.subr.mxu0 0.0
  %72 = vmatpush1.msra.mxu0 %v36
  %73 = vmatprep.subr.mxu0 0.0
  %74 = vmatpush1.msra.mxu0 %v37
  %75 = vmatprep.subr.mxu0 0.0
  %76 = vmatpush1.msra.mxu0 %v38
  %77 = vmatprep.subr.mxu0 0.0
  %78 = vmatpush1.msra.mxu0 %v39
  %79 = vmatprep.subr.mxu0 0.0
  %80 = vmatpush1.msra.mxu0 0.0
  %81 = vmatprep.subr.mxu0 0.0
  %82 = vmatpush1.msra.mxu0 0.0
  %83 = vmatprep.subr.mxu0 0.0
  %84 = vmatpush1.msra.mxu0 0.0
  %85 = vmatprep.subr.mxu0 0.0
  %86 = vmatpush1.msra.mxu0 0.0
  %87 = vmatprep.subr.mxu0 0.0
  %88 = vmatpush1.msra.mxu0 0.0
  %89 = vmatprep.subr.mxu0 0.0
  %90 = vmatpush1.msra.mxu0 0.0
  %91 = vmatprep.subr.mxu0 0.0
  %92 = vmatpush1.msra.mxu0 0.0
  %93 = vmatprep.subr.mxu0 0.0
  %94 = vmatpush1.msra.mxu0 0.0
  %95 = vmatprep.subr.mxu0 0.0
  %96 = vmatpush1.msra.mxu0 0.0
  %97 = vmatprep.subr.mxu0 0.0
  %98 = vmatpush1.msra.mxu0 0.0
  %99 = vmatprep.subr.mxu0 0.0
  %100 = vmatpush1.msra.mxu0 0.0
  %101 = vmatprep.subr.mxu0 0.0
  %102 = vmatpush1.msra.mxu0 0.0
  %103 = vmatprep.subr.mxu0 0.0
  %104 = vmatpush1.msra.mxu0 0.0
  %105 = vmatprep.subr.mxu0 0.0
  %106 = vmatpush1.msra.mxu0 0.0
  %107 = vmatprep.subr.mxu0 0.0
  %108 = vmatpush1.msra.mxu0 0.0
  %109 = vmatprep.subr.mxu0 0.0
  %110 = vmatpush1.msra.mxu0 0.0
  %111 = vmatprep.mubr.f32.mxu0 0.0
  %112 = vmatmul.mubr.f32.gmra.mrb[0].mxu0 %v22
  %v113 = vpop.f32.mrb[0].mxu0
  %v114 = vadd.f32 %v45, %v113
  %v115 = vpop.f32.mrb[0].mxu0
  %116 = vmatprep.mubr.f32.mxu0 0.0
  %117 = vmatmul.mubr.f32.gmra.mrb[0].mxu0 %v23
  %v118 = vpop.f32.mrb[0].mxu0
  %v119 = vadd.f32 %v45, %v118
  %v120 = vpop.f32.mrb[0].mxu0
  %121 = vdwg.mxu0
  %s122 = scalar_lea.vmem %s1, 128
  %v123 = vld [vmem:[%s122] sm:$0xff]
  %v124 = vld [vmem:[%s122 + $0x8] sm:$0xff]
  %v125 = vld [vmem:[%s122 + $0x10] sm:$0xff]
  %v126 = vld [vmem:[%s122 + $0x18] sm:$0xff]
  %v127 = vld [vmem:[%s122 + $0x20] sm:$0xff]
  %v128 = vld [vmem:[%s122 + $0x28] sm:$0xff]
  %v129 = vld [vmem:[%s122 + $0x30] sm:$0xff]
  %v130 = vld [vmem:[%s122 + $0x38] sm:$0xff]
  %v131 = vld [vmem:[%s122 + $0x40] sm:$0xff]
  %v132 = vld [vmem:[%s122 + $0x48] sm:$0xff]
  %v133 = vld [vmem:[%s122 + $0x50] sm:$0xff]
  %v134 = vld [vmem:[%s122 + $0x58] sm:$0xff]
  %v135 = vld [vmem:[%s122 + $0x60] sm:$0xff]
  %v136 = vld [vmem:[%s122 + $0x68] sm:$0xff]
  %v137 = vld [vmem:[%s122 + $0x70] sm:$0xff]
  %v138 = vld [vmem:[%s122 + $0x78] sm:$0xff]
  %s139 = scalar_lea.vmem %s2, 1
  %v140 = vld [vmem:[%s139] sm:$0x1]
  %v142 = vlaneseq
  %v143 = vshrl.u32 %v142, 7
  %v144 = vsub.s32 0, %v143
  %v145 = vrot.slane %v140, %v144
  %147 = vmatprep.subr.mxu0 0.0
  %148 = vmatpush1.msra.mxu0 %v123
  %149 = vmatprep.subr.mxu0 0.0
  %150 = vmatpush1.msra.mxu0 %v124
  %151 = vmatprep.subr.mxu0 0.0
  %152 = vmatpush1.msra.mxu0 %v125
  %153 = vmatprep.subr.mxu0 0.0
  %154 = vmatpush1.msra.mxu0 %v126
  %155 = vmatprep.subr.mxu0 0.0
  %156 = vmatpush1.msra.mxu0 %v127
  %157 = vmatprep.subr.mxu0 0.0
  %158 = vmatpush1.msra.mxu0 %v128
  %159 = vmatprep.subr.mxu0 0.0
  %160 = vmatpush1.msra.mxu0 %v129
  %161 = vmatprep.subr.mxu0 0.0
  %162 = vmatpush1.msra.mxu0 %v130
  %163 = vmatprep.subr.mxu0 0.0
  %164 = vmatpush1.msra.mxu0 %v131
  %165 = vmatprep.subr.mxu0 0.0
  %166 = vmatpush1.msra.mxu0 %v132
  %167 = vmatprep.subr.mxu0 0.0
  %168 = vmatpush1.msra.mxu0 %v133
  %169 = vmatprep.subr.mxu0 0.0
  %170 = vmatpush1.msra.mxu0 %v134
  %171 = vmatprep.subr.mxu0 0.0
  %172 = vmatpush1.msra.mxu0 %v135
  %173 = vmatprep.subr.mxu0 0.0
  %174 = vmatpush1.msra.mxu0 %v136
  %175 = vmatprep.subr.mxu0 0.0
  %176 = vmatpush1.msra.mxu0 %v137
  %177 = vmatprep.subr.mxu0 0.0
  %178 = vmatpush1.msra.mxu0 %v138
  %179 = vmatprep.subr.mxu0 0.0
  %180 = vmatpush1.msra.mxu0 0.0
  %181 = vmatprep.subr.mxu0 0.0
  %182 = vmatpush1.msra.mxu0 0.0
  %183 = vmatprep.subr.mxu0 0.0
  %184 = vmatpush1.msra.mxu0 0.0
  %185 = vmatprep.subr.mxu0 0.0
  %186 = vmatpush1.msra.mxu0 0.0
  %187 = vmatprep.subr.mxu0 0.0
  %188 = vmatpush1.msra.mxu0 0.0
  %189 = vmatprep.subr.mxu0 0.0
  %190 = vmatpush1.msra.mxu0 0.0
  %191 = vmatprep.subr.mxu0 0.0
  %192 = vmatpush1.msra.mxu0 0.0
  %193 = vmatprep.subr.mxu0 0.0
  %194 = vmatpush1.msra.mxu0 0.0
  %195 = vmatprep.subr.mxu0 0.0
  %196 = vmatpush1.msra.mxu0 0.0
  %197 = vmatprep.subr.mxu0 0.0
  %198 = vmatpush1.msra.mxu0 0.0
  %199 = vmatprep.subr.mxu0 0.0
  %200 = vmatpush1.msra.mxu0 0.0
  %201 = vmatprep.subr.mxu0 0.0
  %202 = vmatpush1.msra.mxu0 0.0
  %203 = vmatprep.subr.mxu0 0.0
  %204 = vmatpush1.msra.mxu0 0.0
  %205 = vmatprep.subr.mxu0 0.0
  %206 = vmatpush1.msra.mxu0 0.0
  %207 = vmatprep.subr.mxu0 0.0
  %208 = vmatpush1.msra.mxu0 0.0
  %209 = vmatprep.subr.mxu0 0.0
  %210 = vmatpush1.msra.mxu0 0.0
  %211 = vmatprep.mubr.f32.mxu0 0.0
  %212 = vmatmul.mubr.f32.gmra.mrb[0].mxu0 %v114
  %v213 = vpop.f32.mrb[0].mxu0
  %v214 = vadd.f32 %v145, %v213
  %v215 = vpop.f32.mrb[0].mxu0
  %216 = vmatprep.mubr.f32.mxu0 0.0
  %217 = vmatmul.mubr.f32.gmra.mrb[0].mxu0 %v119
  %v218 = vpop.f32.mrb[0].mxu0
  %v219 = vadd.f32 %v145, %v218
  %v220 = vpop.f32.mrb[0].mxu0
  %221 = vdwg.mxu0
  %s222 = scalar_lea.vmem %s1, 256
  %v223 = vld [vmem:[%s222] sm:$0xff]
  %v224 = vld [vmem:[%s222 + $0x8] sm:$0xff]
  %v225 = vld [vmem:[%s222 + $0x10] sm:$0xff]
  %v226 = vld [vmem:[%s222 + $0x18] sm:$0xff]
  %v227 = vld [vmem:[%s222 + $0x20] sm:$0xff]
  %v228 = vld [vmem:[%s222 + $0x28] sm:$0xff]
  %v229 = vld [vmem:[%s222 + $0x30] sm:$0xff]
  %v230 = vld [vmem:[%s222 + $0x38] sm:$0xff]
  %v231 = vld [vmem:[%s222 + $0x40] sm:$0xff]
  %v232 = vld [vmem:[%s222 + $0x48] sm:$0xff]
  %v233 = vld [vmem:[%s222 + $0x50] sm:$0xff]
  %v234 = vld [vmem:[%s222 + $0x58] sm:$0xff]
  %v235 = vld [vmem:[%s222 + $0x60] sm:$0xff]
  %v236 = vld [vmem:[%s222 + $0x68] sm:$0xff]
  %v237 = vld [vmem:[%s222 + $0x70] sm:$0xff]
  %v238 = vld [vmem:[%s222 + $0x78] sm:$0xff]
  %s239 = scalar_lea.vmem %s2, 2
  %v240 = vld [vmem:[%s239] sm:$0x1]
  %v242 = vlaneseq
  %v243 = vshrl.u32 %v242, 7
  %v244 = vsub.s32 0, %v243
  %v245 = vrot.slane %v240, %v244
  %247 = vmatprep.subr.mxu0 0.0
  %248 = vmatpush1.msra.mxu0 %v223
  %249 = vmatprep.subr.mxu0 0.0
  %250 = vmatpush1.msra.mxu0 %v224
  %251 = vmatprep.subr.mxu0 0.0
  %252 = vmatpush1.msra.mxu0 %v225
  %253 = vmatprep.subr.mxu0 0.0
  %254 = vmatpush1.msra.mxu0 %v226
  %255 = vmatprep.subr.mxu0 0.0
  %256 = vmatpush1.msra.mxu0 %v227
  %257 = vmatprep.subr.mxu0 0.0
  %258 = vmatpush1.msra.mxu0 %v228
  %259 = vmatprep.subr.mxu0 0.0
  %260 = vmatpush1.msra.mxu0 %v229
  %261 = vmatprep.subr.mxu0 0.0
  %262 = vmatpush1.msra.mxu0 %v230
  %263 = vmatprep.subr.mxu0 0.0
  %264 = vmatpush1.msra.mxu0 %v231
  %265 = vmatprep.subr.mxu0 0.0
  %266 = vmatpush1.msra.mxu0 %v232
  %267 = vmatprep.subr.mxu0 0.0
  %268 = vmatpush1.msra.mxu0 %v233
  %269 = vmatprep.subr.mxu0 0.0
  %270 = vmatpush1.msra.mxu0 %v234
  %271 = vmatprep.subr.mxu0 0.0
  %272 = vmatpush1.msra.mxu0 %v235
  %273 = vmatprep.subr.mxu0 0.0
  %274 = vmatpush1.msra.mxu0 %v236
  %275 = vmatprep.subr.mxu0 0.0
  %276 = vmatpush1.msra.mxu0 %v237
  %277 = vmatprep.subr.mxu0 0.0
  %278 = vmatpush1.msra.mxu0 %v238
  %279 = vmatprep.subr.mxu0 0.0
  %280 = vmatpush1.msra.mxu0 0.0
  %281 = vmatprep.subr.mxu0 0.0
  %282 = vmatpush1.msra.mxu0 0.0
  %283 = vmatprep.subr.mxu0 0.0
  %284 = vmatpush1.msra.mxu0 0.0
  %285 = vmatprep.subr.mxu0 0.0
  %286 = vmatpush1.msra.mxu0 0.0
  %287 = vmatprep.subr.mxu0 0.0
  %288 = vmatpush1.msra.mxu0 0.0
  %289 = vmatprep.subr.mxu0 0.0
  %290 = vmatpush1.msra.mxu0 0.0
  %291 = vmatprep.subr.mxu0 0.0
  %292 = vmatpush1.msra.mxu0 0.0
  %293 = vmatprep.subr.mxu0 0.0
  %294 = vmatpush1.msra.mxu0 0.0
  %295 = vmatprep.subr.mxu0 0.0
  %296 = vmatpush1.msra.mxu0 0.0
  %297 = vmatprep.subr.mxu0 0.0
  %298 = vmatpush1.msra.mxu0 0.0
  %299 = vmatprep.subr.mxu0 0.0
  %300 = vmatpush1.msra.mxu0 0.0
  %301 = vmatprep.subr.mxu0 0.0
  %302 = vmatpush1.msra.mxu0 0.0
  %303 = vmatprep.subr.mxu0 0.0
  %304 = vmatpush1.msra.mxu0 0.0
  %305 = vmatprep.subr.mxu0 0.0
  %306 = vmatpush1.msra.mxu0 0.0
  %307 = vmatprep.subr.mxu0 0.0
  %308 = vmatpush1.msra.mxu0 0.0
  %309 = vmatprep.subr.mxu0 0.0
  %310 = vmatpush1.msra.mxu0 0.0
  %311 = vmatprep.mubr.f32.mxu0 0.0
  %312 = vmatmul.mubr.f32.gmra.mrb[0].mxu0 %v214
  %v313 = vpop.f32.mrb[0].mxu0
  %v314 = vadd.f32 %v245, %v313
  %v315 = vpop.f32.mrb[0].mxu0
  %316 = vmatprep.mubr.f32.mxu0 0.0
  %317 = vmatmul.mubr.f32.gmra.mrb[0].mxu0 %v219
  %v318 = vpop.f32.mrb[0].mxu0
  %v319 = vadd.f32 %v245, %v318
  %v320 = vpop.f32.mrb[0].mxu0
  %321 = vdwg.mxu0
  %s322 = scalar_lea.vmem %s1, 384
  %v323 = vld [vmem:[%s322] sm:$0xff]
  %v324 = vld [vmem:[%s322 + $0x8] sm:$0xff]
  %v325 = vld [vmem:[%s322 + $0x10] sm:$0xff]
  %v326 = vld [vmem:[%s322 + $0x18] sm:$0xff]
  %v327 = vld [vmem:[%s322 + $0x20] sm:$0xff]
  %v328 = vld [vmem:[%s322 + $0x28] sm:$0xff]
  %v329 = vld [vmem:[%s322 + $0x30] sm:$0xff]
  %v330 = vld [vmem:[%s322 + $0x38] sm:$0xff]
  %v331 = vld [vmem:[%s322 + $0x40] sm:$0xff]
  %v332 = vld [vmem:[%s322 + $0x48] sm:$0xff]
  %v333 = vld [vmem:[%s322 + $0x50] sm:$0xff]
  %v334 = vld [vmem:[%s322 + $0x58] sm:$0xff]
  %v335 = vld [vmem:[%s322 + $0x60] sm:$0xff]
  %v336 = vld [vmem:[%s322 + $0x68] sm:$0xff]
  %v337 = vld [vmem:[%s322 + $0x70] sm:$0xff]
  %v338 = vld [vmem:[%s322 + $0x78] sm:$0xff]
  %s339 = scalar_lea.vmem %s2, 3
  %v340 = vld [vmem:[%s339] sm:$0x1]
  %v342 = vlaneseq
  %v343 = vshrl.u32 %v342, 7
  %v344 = vsub.s32 0, %v343
  %v345 = vrot.slane %v340, %v344
  %347 = vmatprep.subr.mxu0 0.0
  %348 = vmatpush1.msra.mxu0 %v323
  %349 = vmatprep.subr.mxu0 0.0
  %350 = vmatpush1.msra.mxu0 %v324
  %351 = vmatprep.subr.mxu0 0.0
  %352 = vmatpush1.msra.mxu0 %v325
  %353 = vmatprep.subr.mxu0 0.0
  %354 = vmatpush1.msra.mxu0 %v326
  %355 = vmatprep.subr.mxu0 0.0
  %356 = vmatpush1.msra.mxu0 %v327
  %357 = vmatprep.subr.mxu0 0.0
  %358 = vmatpush1.msra.mxu0 %v328
  %359 = vmatprep.subr.mxu0 0.0
  %360 = vmatpush1.msra.mxu0 %v329
  %361 = vmatprep.subr.mxu0 0.0
  %362 = vmatpush1.msra.mxu0 %v330
  %363 = vmatprep.subr.mxu0 0.0
  %364 = vmatpush1.msra.mxu0 %v331
  %365 = vmatprep.subr.mxu0 0.0
  %366 = vmatpush1.msra.mxu0 %v332
  %367 = vmatprep.subr.mxu0 0.0
  %368 = vmatpush1.msra.mxu0 %v333
  %369 = vmatprep.subr.mxu0 0.0
  %370 = vmatpush1.msra.mxu0 %v334
  %371 = vmatprep.subr.mxu0 0.0
  %372 = vmatpush1.msra.mxu0 %v335
  %373 = vmatprep.subr.mxu0 0.0
  %374 = vmatpush1.msra.mxu0 %v336
  %375 = vmatprep.subr.mxu0 0.0
  %376 = vmatpush1.msra.mxu0 %v337
  %377 = vmatprep.subr.mxu0 0.0
  %378 = vmatpush1.msra.mxu0 %v338
  %379 = vmatprep.subr.mxu0 0.0
  %380 = vmatpush1.msra.mxu0 0.0
  %381 = vmatprep.subr.mxu0 0.0
  %382 = vmatpush1.msra.mxu0 0.0
  %383 = vmatprep.subr.mxu0 0.0
  %384 = vmatpush1.msra.mxu0 0.0
  %385 = vmatprep.subr.mxu0 0.0
  %386 = vmatpush1.msra.mxu0 0.0
  %387 = vmatprep.subr.mxu0 0.0
  %388 = vmatpush1.msra.mxu0 0.0
  %389 = vmatprep.subr.mxu0 0.0
  %390 = vmatpush1.msra.mxu0 0.0
  %391 = vmatprep.subr.mxu0 0.0
  %392 = vmatpush1.msra.mxu0 0.0
  %393 = vmatprep.subr.mxu0 0.0
  %394 = vmatpush1.msra.mxu0 0.0
  %395 = vmatprep.subr.mxu0 0.0
  %396 = vmatpush1.msra.mxu0 0.0
  %397 = vmatprep.subr.mxu0 0.0
  %398 = vmatpush1.msra.mxu0 0.0
  %399 = vmatprep.subr.mxu0 0.0
  %400 = vmatpush1.msra.mxu0 0.0
  %401 = vmatprep.subr.mxu0 0.0
  %402 = vmatpush1.msra.mxu0 0.0
  %403 = vmatprep.subr.mxu0 0.0
  %404 = vmatpush1.msra.mxu0 0.0
  %405 = vmatprep.subr.mxu0 0.0
  %406 = vmatpush1.msra.mxu0 0.0
  %407 = vmatprep.subr.mxu0 0.0
  %408 = vmatpush1.msra.mxu0 0.0
  %409 = vmatprep.subr.mxu0 0.0
  %410 = vmatpush1.msra.mxu0 0.0
  %411 = vmatprep.mubr.f32.mxu0 0.0
  %412 = vmatmul.mubr.f32.gmra.mrb[0].mxu0 %v314
  %v413 = vpop.f32.mrb[0].mxu0
  %v414 = vadd.f32 %v345, %v413
  %v415 = vpop.f32.mrb[0].mxu0
  %416 = vmatprep.mubr.f32.mxu0 0.0
  %417 = vmatmul.mubr.f32.gmra.mrb[0].mxu0 %v319
  %v418 = vpop.f32.mrb[0].mxu0
  %v419 = vadd.f32 %v345, %v418
  %v420 = vpop.f32.mrb[0].mxu0
  %421 = vdwg.mxu0
  %s422 = scalar_lea.vmem %s1, 512
  %v423 = vld [vmem:[%s422] sm:$0xff]
  %v424 = vld [vmem:[%s422 + $0x8] sm:$0xff]
  %v425 = vld [vmem:[%s422 + $0x10] sm:$0xff]
  %v426 = vld [vmem:[%s422 + $0x18] sm:$0xff]
  %v427 = vld [vmem:[%s422 + $0x20] sm:$0xff]
  %v428 = vld [vmem:[%s422 + $0x28] sm:$0xff]
  %v429 = vld [vmem:[%s422 + $0x30] sm:$0xff]
  %v430 = vld [vmem:[%s422 + $0x38] sm:$0xff]
  %v431 = vld [vmem:[%s422 + $0x40] sm:$0xff]
  %v432 = vld [vmem:[%s422 + $0x48] sm:$0xff]
  %v433 = vld [vmem:[%s422 + $0x50] sm:$0xff]
  %v434 = vld [vmem:[%s422 + $0x58] sm:$0xff]
  %v435 = vld [vmem:[%s422 + $0x60] sm:$0xff]
  %v436 = vld [vmem:[%s422 + $0x68] sm:$0xff]
  %v437 = vld [vmem:[%s422 + $0x70] sm:$0xff]
  %v438 = vld [vmem:[%s422 + $0x78] sm:$0xff]
  %s439 = scalar_lea.vmem %s2, 4
  %v440 = vld [vmem:[%s439] sm:$0x1]
  %v442 = vlaneseq
  %v443 = vshrl.u32 %v442, 7
  %v444 = vsub.s32 0, %v443
  %v445 = vrot.slane %v440, %v444
  %447 = vmatprep.subr.mxu0 0.0
  %448 = vmatpush1.msra.mxu0 %v423
  %449 = vmatprep.subr.mxu0 0.0
  %450 = vmatpush1.msra.mxu0 %v424
  %451 = vmatprep.subr.mxu0 0.0
  %452 = vmatpush1.msra.mxu0 %v425
  %453 = vmatprep.subr.mxu0 0.0
  %454 = vmatpush1.msra.mxu0 %v426
  %455 = vmatprep.subr.mxu0 0.0
  %456 = vmatpush1.msra.mxu0 %v427
  %457 = vmatprep.subr.mxu0 0.0
  %458 = vmatpush1.msra.mxu0 %v428
  %459 = vmatprep.subr.mxu0 0.0
  %460 = vmatpush1.msra.mxu0 %v429
  %461 = vmatprep.subr.mxu0 0.0
  %462 = vmatpush1.msra.mxu0 %v430
  %463 = vmatprep.subr.mxu0 0.0
  %464 = vmatpush1.msra.mxu0 %v431
  %465 = vmatprep.subr.mxu0 0.0
  %466 = vmatpush1.msra.mxu0 %v432
  %467 = vmatprep.subr.mxu0 0.0
  %468 = vmatpush1.msra.mxu0 %v433
  %469 = vmatprep.subr.mxu0 0.0
  %470 = vmatpush1.msra.mxu0 %v434
  %471 = vmatprep.subr.mxu0 0.0
  %472 = vmatpush1.msra.mxu0 %v435
  %473 = vmatprep.subr.mxu0 0.0
  %474 = vmatpush1.msra.mxu0 %v436
  %475 = vmatprep.subr.mxu0 0.0
  %476 = vmatpush1.msra.mxu0 %v437
  %477 = vmatprep.subr.mxu0 0.0
  %478 = vmatpush1.msra.mxu0 %v438
  %479 = vmatprep.subr.mxu0 0.0
  %480 = vmatpush1.msra.mxu0 0.0
  %481 = vmatprep.subr.mxu0 0.0
  %482 = vmatpush1.msra.mxu0 0.0
  %483 = vmatprep.subr.mxu0 0.0
  %484 = vmatpush1.msra.mxu0 0.0
  %485 = vmatprep.subr.mxu0 0.0
  %486 = vmatpush1.msra.mxu0 0.0
  %487 = vmatprep.subr.mxu0 0.0
  %488 = vmatpush1.msra.mxu0 0.0
  %489 = vmatprep.subr.mxu0 0.0
  %490 = vmatpush1.msra.mxu0 0.0
  %491 = vmatprep.subr.mxu0 0.0
  %492 = vmatpush1.msra.mxu0 0.0
  %493 = vmatprep.subr.mxu0 0.0
  %494 = vmatpush1.msra.mxu0 0.0
  %495 = vmatprep.subr.mxu0 0.0
  %496 = vmatpush1.msra.mxu0 0.0
  %497 = vmatprep.subr.mxu0 0.0
  %498 = vmatpush1.msra.mxu0 0.0
  %499 = vmatprep.subr.mxu0 0.0
  %500 = vmatpush1.msra.mxu0 0.0
  %501 = vmatprep.subr.mxu0 0.0
  %502 = vmatpush1.msra.mxu0 0.0
  %503 = vmatprep.subr.mxu0 0.0
  %504 = vmatpush1.msra.mxu0 0.0
  %505 = vmatprep.subr.mxu0 0.0
  %506 = vmatpush1.msra.mxu0 0.0
  %507 = vmatprep.subr.mxu0 0.0
  %508 = vmatpush1.msra.mxu0 0.0
  %509 = vmatprep.subr.mxu0 0.0
  %510 = vmatpush1.msra.mxu0 0.0
  %511 = vmatprep.mubr.f32.mxu0 0.0
  %512 = vmatmul.mubr.f32.gmra.mrb[0].mxu0 %v414
  %v513 = vpop.f32.mrb[0].mxu0
  %v514 = vadd.f32 %v445, %v513
  %v515 = vpop.f32.mrb[0].mxu0
  %516 = vmatprep.mubr.f32.mxu0 0.0
  %517 = vmatmul.mubr.f32.gmra.mrb[0].mxu0 %v419
  %v518 = vpop.f32.mrb[0].mxu0
  %v519 = vadd.f32 %v445, %v518
  %v520 = vpop.f32.mrb[0].mxu0
  %521 = vdwg.mxu0
  %s522 = scalar_lea.vmem %s1, 640
  %v523 = vld [vmem:[%s522] sm:$0xff]
  %v524 = vld [vmem:[%s522 + $0x8] sm:$0xff]
  %v525 = vld [vmem:[%s522 + $0x10] sm:$0xff]
  %v526 = vld [vmem:[%s522 + $0x18] sm:$0xff]
  %v527 = vld [vmem:[%s522 + $0x20] sm:$0xff]
  %v528 = vld [vmem:[%s522 + $0x28] sm:$0xff]
  %v529 = vld [vmem:[%s522 + $0x30] sm:$0xff]
  %v530 = vld [vmem:[%s522 + $0x38] sm:$0xff]
  %v531 = vld [vmem:[%s522 + $0x40] sm:$0xff]
  %v532 = vld [vmem:[%s522 + $0x48] sm:$0xff]
  %v533 = vld [vmem:[%s522 + $0x50] sm:$0xff]
  %v534 = vld [vmem:[%s522 + $0x58] sm:$0xff]
  %v535 = vld [vmem:[%s522 + $0x60] sm:$0xff]
  %v536 = vld [vmem:[%s522 + $0x68] sm:$0xff]
  %v537 = vld [vmem:[%s522 + $0x70] sm:$0xff]
  %v538 = vld [vmem:[%s522 + $0x78] sm:$0xff]
  %s539 = scalar_lea.vmem %s2, 5
  %v540 = vld [vmem:[%s539] sm:$0x1]
  %v542 = vlaneseq
  %v543 = vshrl.u32 %v542, 7
  %v544 = vsub.s32 0, %v543
  %v545 = vrot.slane %v540, %v544
  %547 = vmatprep.subr.mxu0 0.0
  %548 = vmatpush1.msra.mxu0 %v523
  %549 = vmatprep.subr.mxu0 0.0
  %550 = vmatpush1.msra.mxu0 %v524
  %551 = vmatprep.subr.mxu0 0.0
  %552 = vmatpush1.msra.mxu0 %v525
  %553 = vmatprep.subr.mxu0 0.0
  %554 = vmatpush1.msra.mxu0 %v526
  %555 = vmatprep.subr.mxu0 0.0
  %556 = vmatpush1.msra.mxu0 %v527
  %557 = vmatprep.subr.mxu0 0.0
  %558 = vmatpush1.msra.mxu0 %v528
  %559 = vmatprep.subr.mxu0 0.0
  %560 = vmatpush1.msra.mxu0 %v529
  %561 = vmatprep.subr.mxu0 0.0
  %562 = vmatpush1.msra.mxu0 %v530
  %563 = vmatprep.subr.mxu0 0.0
  %564 = vmatpush1.msra.mxu0 %v531
  %565 = vmatprep.subr.mxu0 0.0
  %566 = vmatpush1.msra.mxu0 %v532
  %567 = vmatprep.subr.mxu0 0.0
  %568 = vmatpush1.msra.mxu0 %v533
  %569 = vmatprep.subr.mxu0 0.0
  %570 = vmatpush1.msra.mxu0 %v534
  %571 = vmatprep.subr.mxu0 0.0
  %572 = vmatpush1.msra.mxu0 %v535
  %573 = vmatprep.subr.mxu0 0.0
  %574 = vmatpush1.msra.mxu0 %v536
  %575 = vmatprep.subr.mxu0 0.0
  %576 = vmatpush1.msra.mxu0 %v537
  %577 = vmatprep.subr.mxu0 0.0
  %578 = vmatpush1.msra.mxu0 %v538
  %579 = vmatprep.subr.mxu0 0.0
  %580 = vmatpush1.msra.mxu0 0.0
  %581 = vmatprep.subr.mxu0 0.0
  %582 = vmatpush1.msra.mxu0 0.0
  %583 = vmatprep.subr.mxu0 0.0
  %584 = vmatpush1.msra.mxu0 0.0
  %585 = vmatprep.subr.mxu0 0.0
  %586 = vmatpush1.msra.mxu0 0.0
  %587 = vmatprep.subr.mxu0 0.0
  %588 = vmatpush1.msra.mxu0 0.0
  %589 = vmatprep.subr.mxu0 0.0
  %590 = vmatpush1.msra.mxu0 0.0
  %591 = vmatprep.subr.mxu0 0.0
  %592 = vmatpush1.msra.mxu0 0.0
  %593 = vmatprep.subr.mxu0 0.0
  %594 = vmatpush1.msra.mxu0 0.0
  %595 = vmatprep.subr.mxu0 0.0
  %596 = vmatpush1.msra.mxu0 0.0
  %597 = vmatprep.subr.mxu0 0.0
  %598 = vmatpush1.msra.mxu0 0.0
  %599 = vmatprep.subr.mxu0 0.0
  %600 = vmatpush1.msra.mxu0 0.0
  %601 = vmatprep.subr.mxu0 0.0
  %602 = vmatpush1.msra.mxu0 0.0
  %603 = vmatprep.subr.mxu0 0.0
  %604 = vmatpush1.msra.mxu0 0.0
  %605 = vmatprep.subr.mxu0 0.0
  %606 = vmatpush1.msra.mxu0 0.0
  %607 = vmatprep.subr.mxu0 0.0
  %608 = vmatpush1.msra.mxu0 0.0
  %609 = vmatprep.subr.mxu0 0.0
  %610 = vmatpush1.msra.mxu0 0.0
  %611 = vmatprep.mubr.f32.mxu0 0.0
  %612 = vmatmul.mubr.f32.gmra.mrb[0].mxu0 %v514
  %v613 = vpop.f32.mrb[0].mxu0
  %v614 = vadd.f32 %v545, %v613
  %v615 = vpop.f32.mrb[0].mxu0
  %616 = vmatprep.mubr.f32.mxu0 0.0
  %617 = vmatmul.mubr.f32.gmra.mrb[0].mxu0 %v519
  %v618 = vpop.f32.mrb[0].mxu0
  %v619 = vadd.f32 %v545, %v618
  %v620 = vpop.f32.mrb[0].mxu0
  %621 = vdwg.mxu0
  %s622 = scalar_lea.vmem %s1, 768
  %v623 = vld [vmem:[%s622] sm:$0xff]
  %v624 = vld [vmem:[%s622 + $0x8] sm:$0xff]
  %v625 = vld [vmem:[%s622 + $0x10] sm:$0xff]
  %v626 = vld [vmem:[%s622 + $0x18] sm:$0xff]
  %v627 = vld [vmem:[%s622 + $0x20] sm:$0xff]
  %v628 = vld [vmem:[%s622 + $0x28] sm:$0xff]
  %v629 = vld [vmem:[%s622 + $0x30] sm:$0xff]
  %v630 = vld [vmem:[%s622 + $0x38] sm:$0xff]
  %v631 = vld [vmem:[%s622 + $0x40] sm:$0xff]
  %v632 = vld [vmem:[%s622 + $0x48] sm:$0xff]
  %v633 = vld [vmem:[%s622 + $0x50] sm:$0xff]
  %v634 = vld [vmem:[%s622 + $0x58] sm:$0xff]
  %v635 = vld [vmem:[%s622 + $0x60] sm:$0xff]
  %v636 = vld [vmem:[%s622 + $0x68] sm:$0xff]
  %v637 = vld [vmem:[%s622 + $0x70] sm:$0xff]
  %v638 = vld [vmem:[%s622 + $0x78] sm:$0xff]
  %s639 = scalar_lea.vmem %s2, 6
  %v640 = vld [vmem:[%s639] sm:$0x1]
  %v642 = vlaneseq
  %v643 = vshrl.u32 %v642, 7
  %v644 = vsub.s32 0, %v643
  %v645 = vrot.slane %v640, %v644
  %647 = vmatprep.subr.mxu0 0.0
  %648 = vmatpush1.msra.mxu0 %v623
  %649 = vmatprep.subr.mxu0 0.0
  %650 = vmatpush1.msra.mxu0 %v624
  %651 = vmatprep.subr.mxu0 0.0
  %652 = vmatpush1.msra.mxu0 %v625
  %653 = vmatprep.subr.mxu0 0.0
  %654 = vmatpush1.msra.mxu0 %v626
  %655 = vmatprep.subr.mxu0 0.0
  %656 = vmatpush1.msra.mxu0 %v627
  %657 = vmatprep.subr.mxu0 0.0
  %658 = vmatpush1.msra.mxu0 %v628
  %659 = vmatprep.subr.mxu0 0.0
  %660 = vmatpush1.msra.mxu0 %v629
  %661 = vmatprep.subr.mxu0 0.0
  %662 = vmatpush1.msra.mxu0 %v630
  %663 = vmatprep.subr.mxu0 0.0
  %664 = vmatpush1.msra.mxu0 %v631
  %665 = vmatprep.subr.mxu0 0.0
  %666 = vmatpush1.msra.mxu0 %v632
  %667 = vmatprep.subr.mxu0 0.0
  %668 = vmatpush1.msra.mxu0 %v633
  %669 = vmatprep.subr.mxu0 0.0
  %670 = vmatpush1.msra.mxu0 %v634
  %671 = vmatprep.subr.mxu0 0.0
  %672 = vmatpush1.msra.mxu0 %v635
  %673 = vmatprep.subr.mxu0 0.0
  %674 = vmatpush1.msra.mxu0 %v636
  %675 = vmatprep.subr.mxu0 0.0
  %676 = vmatpush1.msra.mxu0 %v637
  %677 = vmatprep.subr.mxu0 0.0
  %678 = vmatpush1.msra.mxu0 %v638
  %679 = vmatprep.subr.mxu0 0.0
  %680 = vmatpush1.msra.mxu0 0.0
  %681 = vmatprep.subr.mxu0 0.0
  %682 = vmatpush1.msra.mxu0 0.0
  %683 = vmatprep.subr.mxu0 0.0
  %684 = vmatpush1.msra.mxu0 0.0
  %685 = vmatprep.subr.mxu0 0.0
  %686 = vmatpush1.msra.mxu0 0.0
  %687 = vmatprep.subr.mxu0 0.0
  %688 = vmatpush1.msra.mxu0 0.0
  %689 = vmatprep.subr.mxu0 0.0
  %690 = vmatpush1.msra.mxu0 0.0
  %691 = vmatprep.subr.mxu0 0.0
  %692 = vmatpush1.msra.mxu0 0.0
  %693 = vmatprep.subr.mxu0 0.0
  %694 = vmatpush1.msra.mxu0 0.0
  %695 = vmatprep.subr.mxu0 0.0
  %696 = vmatpush1.msra.mxu0 0.0
  %697 = vmatprep.subr.mxu0 0.0
  %698 = vmatpush1.msra.mxu0 0.0
  %699 = vmatprep.subr.mxu0 0.0
  %700 = vmatpush1.msra.mxu0 0.0
  %701 = vmatprep.subr.mxu0 0.0
  %702 = vmatpush1.msra.mxu0 0.0
  %703 = vmatprep.subr.mxu0 0.0
  %704 = vmatpush1.msra.mxu0 0.0
  %705 = vmatprep.subr.mxu0 0.0
  %706 = vmatpush1.msra.mxu0 0.0
  %707 = vmatprep.subr.mxu0 0.0
  %708 = vmatpush1.msra.mxu0 0.0
  %709 = vmatprep.subr.mxu0 0.0
  %710 = vmatpush1.msra.mxu0 0.0
  %711 = vmatprep.mubr.f32.mxu0 0.0
  %712 = vmatmul.mubr.f32.gmra.mrb[0].mxu0 %v614
  %v713 = vpop.f32.mrb[0].mxu0
  %v714 = vadd.f32 %v645, %v713
  %v715 = vpop.f32.mrb[0].mxu0
  %716 = vmatprep.mubr.f32.mxu0 0.0
  %717 = vmatmul.mubr.f32.gmra.mrb[0].mxu0 %v619
  %v718 = vpop.f32.mrb[0].mxu0
  %v719 = vadd.f32 %v645, %v718
  %v720 = vpop.f32.mrb[0].mxu0
  %721 = vdwg.mxu0
  %s722 = scalar_lea.vmem %s1, 896
  %v723 = vld [vmem:[%s722] sm:$0xff]
  %v724 = vld [vmem:[%s722 + $0x8] sm:$0xff]
  %v725 = vld [vmem:[%s722 + $0x10] sm:$0xff]
  %v726 = vld [vmem:[%s722 + $0x18] sm:$0xff]
  %v727 = vld [vmem:[%s722 + $0x20] sm:$0xff]
  %v728 = vld [vmem:[%s722 + $0x28] sm:$0xff]
  %v729 = vld [vmem:[%s722 + $0x30] sm:$0xff]
  %v730 = vld [vmem:[%s722 + $0x38] sm:$0xff]
  %v731 = vld [vmem:[%s722 + $0x40] sm:$0xff]
  %v732 = vld [vmem:[%s722 + $0x48] sm:$0xff]
  %v733 = vld [vmem:[%s722 + $0x50] sm:$0xff]
  %v734 = vld [vmem:[%s722 + $0x58] sm:$0xff]
  %v735 = vld [vmem:[%s722 + $0x60] sm:$0xff]
  %v736 = vld [vmem:[%s722 + $0x68] sm:$0xff]
  %v737 = vld [vmem:[%s722 + $0x70] sm:$0xff]
  %v738 = vld [vmem:[%s722 + $0x78] sm:$0xff]
  %s739 = scalar_lea.vmem %s2, 7
  %v740 = vld [vmem:[%s739] sm:$0x1]
  %v742 = vlaneseq
  %v743 = vshrl.u32 %v742, 7
  %v744 = vsub.s32 0, %v743
  %v745 = vrot.slane %v740, %v744
  %747 = vmatprep.subr.mxu0 0.0
  %748 = vmatpush1.msra.mxu0 %v723
  %749 = vmatprep.subr.mxu0 0.0
  %750 = vmatpush1.msra.mxu0 %v724
  %751 = vmatprep.subr.mxu0 0.0
  %752 = vmatpush1.msra.mxu0 %v725
  %753 = vmatprep.subr.mxu0 0.0
  %754 = vmatpush1.msra.mxu0 %v726
  %755 = vmatprep.subr.mxu0 0.0
  %756 = vmatpush1.msra.mxu0 %v727
  %757 = vmatprep.subr.mxu0 0.0
  %758 = vmatpush1.msra.mxu0 %v728
  %759 = vmatprep.subr.mxu0 0.0
  %760 = vmatpush1.msra.mxu0 %v729
  %761 = vmatprep.subr.mxu0 0.0
  %762 = vmatpush1.msra.mxu0 %v730
  %763 = vmatprep.subr.mxu0 0.0
  %764 = vmatpush1.msra.mxu0 %v731
  %765 = vmatprep.subr.mxu0 0.0
  %766 = vmatpush1.msra.mxu0 %v732
  %767 = vmatprep.subr.mxu0 0.0
  %768 = vmatpush1.msra.mxu0 %v733
  %769 = vmatprep.subr.mxu0 0.0
  %770 = vmatpush1.msra.mxu0 %v734
  %771 = vmatprep.subr.mxu0 0.0
  %772 = vmatpush1.msra.mxu0 %v735
  %773 = vmatprep.subr.mxu0 0.0
  %774 = vmatpush1.msra.mxu0 %v736
  %775 = vmatprep.subr.mxu0 0.0
  %776 = vmatpush1.msra.mxu0 %v737
  %777 = vmatprep.subr.mxu0 0.0
  %778 = vmatpush1.msra.mxu0 %v738
  %779 = vmatprep.subr.mxu0 0.0
  %780 = vmatpush1.msra.mxu0 0.0
  %781 = vmatprep.subr.mxu0 0.0
  %782 = vmatpush1.msra.mxu0 0.0
  %783 = vmatprep.subr.mxu0 0.0
  %784 = vmatpush1.msra.mxu0 0.0
  %785 = vmatprep.subr.mxu0 0.0
  %786 = vmatpush1.msra.mxu0 0.0
  %787 = vmatprep.subr.mxu0 0.0
  %788 = vmatpush1.msra.mxu0 0.0
  %789 = vmatprep.subr.mxu0 0.0
  %790 = vmatpush1.msra.mxu0 0.0
  %791 = vmatprep.subr.mxu0 0.0
  %792 = vmatpush1.msra.mxu0 0.0
  %793 = vmatprep.subr.mxu0 0.0
  %794 = vmatpush1.msra.mxu0 0.0
  %795 = vmatprep.subr.mxu0 0.0
  %796 = vmatpush1.msra.mxu0 0.0
  %797 = vmatprep.subr.mxu0 0.0
  %798 = vmatpush1.msra.mxu0 0.0
  %799 = vmatprep.subr.mxu0 0.0
  %800 = vmatpush1.msra.mxu0 0.0
  %801 = vmatprep.subr.mxu0 0.0
  %802 = vmatpush1.msra.mxu0 0.0
  %803 = vmatprep.subr.mxu0 0.0
  %804 = vmatpush1.msra.mxu0 0.0
  %805 = vmatprep.subr.mxu0 0.0
  %806 = vmatpush1.msra.mxu0 0.0
  %807 = vmatprep.subr.mxu0 0.0
  %808 = vmatpush1.msra.mxu0 0.0
  %809 = vmatprep.subr.mxu0 0.0
  %810 = vmatpush1.msra.mxu0 0.0
  %811 = vmatprep.mubr.f32.mxu0 0.0
  %812 = vmatmul.mubr.f32.gmra.mrb[0].mxu0 %v714
  %v813 = vpop.f32.mrb[0].mxu0
  %v814 = vadd.f32 %v745, %v813
  %v815 = vpop.f32.mrb[0].mxu0
  %816 = vmatprep.mubr.f32.mxu0 0.0
  %817 = vmatmul.mubr.f32.gmra.mrb[0].mxu0 %v719
  %v818 = vpop.f32.mrb[0].mxu0
  %v819 = vadd.f32 %v745, %v818
  %v820 = vpop.f32.mrb[0].mxu0
  %821 = vdwg.mxu0
  %s822 = scalar_lea.vmem %s1, 1024
  %v823 = vld [vmem:[%s822] sm:$0xff]
  %v824 = vld [vmem:[%s822 + $0x8] sm:$0xff]
  %v825 = vld [vmem:[%s822 + $0x10] sm:$0xff]
  %v826 = vld [vmem:[%s822 + $0x18] sm:$0xff]
  %v827 = vld [vmem:[%s822 + $0x20] sm:$0xff]
  %v828 = vld [vmem:[%s822 + $0x28] sm:$0xff]
  %v829 = vld [vmem:[%s822 + $0x30] sm:$0xff]
  %v830 = vld [vmem:[%s822 + $0x38] sm:$0xff]
  %v831 = vld [vmem:[%s822 + $0x40] sm:$0xff]
  %v832 = vld [vmem:[%s822 + $0x48] sm:$0xff]
  %v833 = vld [vmem:[%s822 + $0x50] sm:$0xff]
  %v834 = vld [vmem:[%s822 + $0x58] sm:$0xff]
  %v835 = vld [vmem:[%s822 + $0x60] sm:$0xff]
  %v836 = vld [vmem:[%s822 + $0x68] sm:$0xff]
  %v837 = vld [vmem:[%s822 + $0x70] sm:$0xff]
  %v838 = vld [vmem:[%s822 + $0x78] sm:$0xff]
  %s839 = scalar_lea.vmem %s2, 8
  %v840 = vld [vmem:[%s839] sm:$0x1]
  %v842 = vlaneseq
  %v843 = vshrl.u32 %v842, 7
  %v844 = vsub.s32 0, %v843
  %v845 = vrot.slane %v840, %v844
  %847 = vmatprep.subr.mxu0 0.0
  %848 = vmatpush1.msra.mxu0 %v823
  %849 = vmatprep.subr.mxu0 0.0
  %850 = vmatpush1.msra.mxu0 %v824
  %851 = vmatprep.subr.mxu0 0.0
  %852 = vmatpush1.msra.mxu0 %v825
  %853 = vmatprep.subr.mxu0 0.0
  %854 = vmatpush1.msra.mxu0 %v826
  %855 = vmatprep.subr.mxu0 0.0
  %856 = vmatpush1.msra.mxu0 %v827
  %857 = vmatprep.subr.mxu0 0.0
  %858 = vmatpush1.msra.mxu0 %v828
  %859 = vmatprep.subr.mxu0 0.0
  %860 = vmatpush1.msra.mxu0 %v829
  %861 = vmatprep.subr.mxu0 0.0
  %862 = vmatpush1.msra.mxu0 %v830
  %863 = vmatprep.subr.mxu0 0.0
  %864 = vmatpush1.msra.mxu0 %v831
  %865 = vmatprep.subr.mxu0 0.0
  %866 = vmatpush1.msra.mxu0 %v832
  %867 = vmatprep.subr.mxu0 0.0
  %868 = vmatpush1.msra.mxu0 %v833
  %869 = vmatprep.subr.mxu0 0.0
  %870 = vmatpush1.msra.mxu0 %v834
  %871 = vmatprep.subr.mxu0 0.0
  %872 = vmatpush1.msra.mxu0 %v835
  %873 = vmatprep.subr.mxu0 0.0
  %874 = vmatpush1.msra.mxu0 %v836
  %875 = vmatprep.subr.mxu0 0.0
  %876 = vmatpush1.msra.mxu0 %v837
  %877 = vmatprep.subr.mxu0 0.0
  %878 = vmatpush1.msra.mxu0 %v838
  %879 = vmatprep.subr.mxu0 0.0
  %880 = vmatpush1.msra.mxu0 0.0
  %881 = vmatprep.subr.mxu0 0.0
  %882 = vmatpush1.msra.mxu0 0.0
  %883 = vmatprep.subr.mxu0 0.0
  %884 = vmatpush1.msra.mxu0 0.0
  %885 = vmatprep.subr.mxu0 0.0
  %886 = vmatpush1.msra.mxu0 0.0
  %887 = vmatprep.subr.mxu0 0.0
  %888 = vmatpush1.msra.mxu0 0.0
  %889 = vmatprep.subr.mxu0 0.0
  %890 = vmatpush1.msra.mxu0 0.0
  %891 = vmatprep.subr.mxu0 0.0
  %892 = vmatpush1.msra.mxu0 0.0
  %893 = vmatprep.subr.mxu0 0.0
  %894 = vmatpush1.msra.mxu0 0.0
  %895 = vmatprep.subr.mxu0 0.0
  %896 = vmatpush1.msra.mxu0 0.0
  %897 = vmatprep.subr.mxu0 0.0
  %898 = vmatpush1.msra.mxu0 0.0
  %899 = vmatprep.subr.mxu0 0.0
  %900 = vmatpush1.msra.mxu0 0.0
  %901 = vmatprep.subr.mxu0 0.0
  %902 = vmatpush1.msra.mxu0 0.0
  %903 = vmatprep.subr.mxu0 0.0
  %904 = vmatpush1.msra.mxu0 0.0
  %905 = vmatprep.subr.mxu0 0.0
  %906 = vmatpush1.msra.mxu0 0.0
  %907 = vmatprep.subr.mxu0 0.0
  %908 = vmatpush1.msra.mxu0 0.0
  %909 = vmatprep.subr.mxu0 0.0
  %910 = vmatpush1.msra.mxu0 0.0
  %911 = vmatprep.mubr.f32.mxu0 0.0
  %912 = vmatmul.mubr.f32.gmra.mrb[0].mxu0 %v814
  %v913 = vpop.f32.mrb[0].mxu0
  %v914 = vadd.f32 %v845, %v913
  %v915 = vpop.f32.mrb[0].mxu0
  %916 = vmatprep.mubr.f32.mxu0 0.0
  %917 = vmatmul.mubr.f32.gmra.mrb[0].mxu0 %v819
  %v918 = vpop.f32.mrb[0].mxu0
  %v919 = vadd.f32 %v845, %v918
  %v920 = vpop.f32.mrb[0].mxu0
  %921 = vdwg.mxu0
  %s922 = scalar_lea.vmem %s1, 1152
  %v923 = vld [vmem:[%s922] sm:$0xff]
  %v924 = vld [vmem:[%s922 + $0x8] sm:$0xff]
  %v925 = vld [vmem:[%s922 + $0x10] sm:$0xff]
  %v926 = vld [vmem:[%s922 + $0x18] sm:$0xff]
  %v927 = vld [vmem:[%s922 + $0x20] sm:$0xff]
  %v928 = vld [vmem:[%s922 + $0x28] sm:$0xff]
  %v929 = vld [vmem:[%s922 + $0x30] sm:$0xff]
  %v930 = vld [vmem:[%s922 + $0x38] sm:$0xff]
  %v931 = vld [vmem:[%s922 + $0x40] sm:$0xff]
  %v932 = vld [vmem:[%s922 + $0x48] sm:$0xff]
  %v933 = vld [vmem:[%s922 + $0x50] sm:$0xff]
  %v934 = vld [vmem:[%s922 + $0x58] sm:$0xff]
  %v935 = vld [vmem:[%s922 + $0x60] sm:$0xff]
  %v936 = vld [vmem:[%s922 + $0x68] sm:$0xff]
  %v937 = vld [vmem:[%s922 + $0x70] sm:$0xff]
  %v938 = vld [vmem:[%s922 + $0x78] sm:$0xff]
  %s939 = scalar_lea.vmem %s2, 9
  %v940 = vld [vmem:[%s939] sm:$0x1]
  %v942 = vlaneseq
  %v943 = vshrl.u32 %v942, 7
  %v944 = vsub.s32 0, %v943
  %v945 = vrot.slane %v940, %v944
  %947 = vmatprep.subr.mxu0 0.0
  %948 = vmatpush1.msra.mxu0 %v923
  %949 = vmatprep.subr.mxu0 0.0
  %950 = vmatpush1.msra.mxu0 %v924
  %951 = vmatprep.subr.mxu0 0.0
  %952 = vmatpush1.msra.mxu0 %v925
  %953 = vmatprep.subr.mxu0 0.0
  %954 = vmatpush1.msra.mxu0 %v926
  %955 = vmatprep.subr.mxu0 0.0
  %956 = vmatpush1.msra.mxu0 %v927
  %957 = vmatprep.subr.mxu0 0.0
  %958 = vmatpush1.msra.mxu0 %v928
  %959 = vmatprep.subr.mxu0 0.0
  %960 = vmatpush1.msra.mxu0 %v929
  %961 = vmatprep.subr.mxu0 0.0
  %962 = vmatpush1.msra.mxu0 %v930
  %963 = vmatprep.subr.mxu0 0.0
  %964 = vmatpush1.msra.mxu0 %v931
  %965 = vmatprep.subr.mxu0 0.0
  %966 = vmatpush1.msra.mxu0 %v932
  %967 = vmatprep.subr.mxu0 0.0
  %968 = vmatpush1.msra.mxu0 %v933
  %969 = vmatprep.subr.mxu0 0.0
  %970 = vmatpush1.msra.mxu0 %v934
  %971 = vmatprep.subr.mxu0 0.0
  %972 = vmatpush1.msra.mxu0 %v935
  %973 = vmatprep.subr.mxu0 0.0
  %974 = vmatpush1.msra.mxu0 %v936
  %975 = vmatprep.subr.mxu0 0.0
  %976 = vmatpush1.msra.mxu0 %v937
  %977 = vmatprep.subr.mxu0 0.0
  %978 = vmatpush1.msra.mxu0 %v938
  %979 = vmatprep.subr.mxu0 0.0
  %980 = vmatpush1.msra.mxu0 0.0
  %981 = vmatprep.subr.mxu0 0.0
  %982 = vmatpush1.msra.mxu0 0.0
  %983 = vmatprep.subr.mxu0 0.0
  %984 = vmatpush1.msra.mxu0 0.0
  %985 = vmatprep.subr.mxu0 0.0
  %986 = vmatpush1.msra.mxu0 0.0
  %987 = vmatprep.subr.mxu0 0.0
  %988 = vmatpush1.msra.mxu0 0.0
  %989 = vmatprep.subr.mxu0 0.0
  %990 = vmatpush1.msra.mxu0 0.0
  %991 = vmatprep.subr.mxu0 0.0
  %992 = vmatpush1.msra.mxu0 0.0
  %993 = vmatprep.subr.mxu0 0.0
  %994 = vmatpush1.msra.mxu0 0.0
  %995 = vmatprep.subr.mxu0 0.0
  %996 = vmatpush1.msra.mxu0 0.0
  %997 = vmatprep.subr.mxu0 0.0
  %998 = vmatpush1.msra.mxu0 0.0
  %999 = vmatprep.subr.mxu0 0.0
  %1000 = vmatpush1.msra.mxu0 0.0
  %1001 = vmatprep.subr.mxu0 0.0
  %1002 = vmatpush1.msra.mxu0 0.0
  %1003 = vmatprep.subr.mxu0 0.0
  %1004 = vmatpush1.msra.mxu0 0.0
  %1005 = vmatprep.subr.mxu0 0.0
  %1006 = vmatpush1.msra.mxu0 0.0
  %1007 = vmatprep.subr.mxu0 0.0
  %1008 = vmatpush1.msra.mxu0 0.0
  %1009 = vmatprep.subr.mxu0 0.0
  %1010 = vmatpush1.msra.mxu0 0.0
  %1011 = vmatprep.mubr.f32.mxu0 0.0
  %1012 = vmatmul.mubr.f32.gmra.mrb[0].mxu0 %v914
  %v1013 = vpop.f32.mrb[0].mxu0
  %v1014 = vadd.f32 %v945, %v1013
  %v1015 = vpop.f32.mrb[0].mxu0
  %1016 = vmatprep.mubr.f32.mxu0 0.0
  %1017 = vmatmul.mubr.f32.gmra.mrb[0].mxu0 %v919
  %v1018 = vpop.f32.mrb[0].mxu0
  %v1019 = vadd.f32 %v945, %v1018
  %v1020 = vpop.f32.mrb[0].mxu0
  %1021 = vdwg.mxu0
  %s1022 = scalar_lea.vmem %s1, 1280
  %v1023 = vld [vmem:[%s1022] sm:$0xff]
  %v1024 = vld [vmem:[%s1022 + $0x8] sm:$0xff]
  %v1025 = vld [vmem:[%s1022 + $0x10] sm:$0xff]
  %v1026 = vld [vmem:[%s1022 + $0x18] sm:$0xff]
  %v1027 = vld [vmem:[%s1022 + $0x20] sm:$0xff]
  %v1028 = vld [vmem:[%s1022 + $0x28] sm:$0xff]
  %v1029 = vld [vmem:[%s1022 + $0x30] sm:$0xff]
  %v1030 = vld [vmem:[%s1022 + $0x38] sm:$0xff]
  %v1031 = vld [vmem:[%s1022 + $0x40] sm:$0xff]
  %v1032 = vld [vmem:[%s1022 + $0x48] sm:$0xff]
  %v1033 = vld [vmem:[%s1022 + $0x50] sm:$0xff]
  %v1034 = vld [vmem:[%s1022 + $0x58] sm:$0xff]
  %v1035 = vld [vmem:[%s1022 + $0x60] sm:$0xff]
  %v1036 = vld [vmem:[%s1022 + $0x68] sm:$0xff]
  %v1037 = vld [vmem:[%s1022 + $0x70] sm:$0xff]
  %v1038 = vld [vmem:[%s1022 + $0x78] sm:$0xff]
  %s1039 = scalar_lea.vmem %s2, 10
  %v1040 = vld [vmem:[%s1039] sm:$0x1]
  %v1042 = vlaneseq
  %v1043 = vshrl.u32 %v1042, 7
  %v1044 = vsub.s32 0, %v1043
  %v1045 = vrot.slane %v1040, %v1044
  %1047 = vmatprep.subr.mxu0 0.0
  %1048 = vmatpush1.msra.mxu0 %v1023
  %1049 = vmatprep.subr.mxu0 0.0
  %1050 = vmatpush1.msra.mxu0 %v1024
  %1051 = vmatprep.subr.mxu0 0.0
  %1052 = vmatpush1.msra.mxu0 %v1025
  %1053 = vmatprep.subr.mxu0 0.0
  %1054 = vmatpush1.msra.mxu0 %v1026
  %1055 = vmatprep.subr.mxu0 0.0
  %1056 = vmatpush1.msra.mxu0 %v1027
  %1057 = vmatprep.subr.mxu0 0.0
  %1058 = vmatpush1.msra.mxu0 %v1028
  %1059 = vmatprep.subr.mxu0 0.0
  %1060 = vmatpush1.msra.mxu0 %v1029
  %1061 = vmatprep.subr.mxu0 0.0
  %1062 = vmatpush1.msra.mxu0 %v1030
  %1063 = vmatprep.subr.mxu0 0.0
  %1064 = vmatpush1.msra.mxu0 %v1031
  %1065 = vmatprep.subr.mxu0 0.0
  %1066 = vmatpush1.msra.mxu0 %v1032
  %1067 = vmatprep.subr.mxu0 0.0
  %1068 = vmatpush1.msra.mxu0 %v1033
  %1069 = vmatprep.subr.mxu0 0.0
  %1070 = vmatpush1.msra.mxu0 %v1034
  %1071 = vmatprep.subr.mxu0 0.0
  %1072 = vmatpush1.msra.mxu0 %v1035
  %1073 = vmatprep.subr.mxu0 0.0
  %1074 = vmatpush1.msra.mxu0 %v1036
  %1075 = vmatprep.subr.mxu0 0.0
  %1076 = vmatpush1.msra.mxu0 %v1037
  %1077 = vmatprep.subr.mxu0 0.0
  %1078 = vmatpush1.msra.mxu0 %v1038
  %1079 = vmatprep.subr.mxu0 0.0
  %1080 = vmatpush1.msra.mxu0 0.0
  %1081 = vmatprep.subr.mxu0 0.0
  %1082 = vmatpush1.msra.mxu0 0.0
  %1083 = vmatprep.subr.mxu0 0.0
  %1084 = vmatpush1.msra.mxu0 0.0
  %1085 = vmatprep.subr.mxu0 0.0
  %1086 = vmatpush1.msra.mxu0 0.0
  %1087 = vmatprep.subr.mxu0 0.0
  %1088 = vmatpush1.msra.mxu0 0.0
  %1089 = vmatprep.subr.mxu0 0.0
  %1090 = vmatpush1.msra.mxu0 0.0
  %1091 = vmatprep.subr.mxu0 0.0
  %1092 = vmatpush1.msra.mxu0 0.0
  %1093 = vmatprep.subr.mxu0 0.0
  %1094 = vmatpush1.msra.mxu0 0.0
  %1095 = vmatprep.subr.mxu0 0.0
  %1096 = vmatpush1.msra.mxu0 0.0
  %1097 = vmatprep.subr.mxu0 0.0
  %1098 = vmatpush1.msra.mxu0 0.0
  %1099 = vmatprep.subr.mxu0 0.0
  %1100 = vmatpush1.msra.mxu0 0.0
  %1101 = vmatprep.subr.mxu0 0.0
  %1102 = vmatpush1.msra.mxu0 0.0
  %1103 = vmatprep.subr.mxu0 0.0
  %1104 = vmatpush1.msra.mxu0 0.0
  %1105 = vmatprep.subr.mxu0 0.0
  %1106 = vmatpush1.msra.mxu0 0.0
  %1107 = vmatprep.subr.mxu0 0.0
  %1108 = vmatpush1.msra.mxu0 0.0
  %1109 = vmatprep.subr.mxu0 0.0
  %1110 = vmatpush1.msra.mxu0 0.0
  %1111 = vmatprep.mubr.f32.mxu0 0.0
  %1112 = vmatmul.mubr.f32.gmra.mrb[0].mxu0 %v1014
  %v1113 = vpop.f32.mrb[0].mxu0
  %v1114 = vadd.f32 %v1045, %v1113
  %v1115 = vpop.f32.mrb[0].mxu0
  %1116 = vmatprep.mubr.f32.mxu0 0.0
  %1117 = vmatmul.mubr.f32.gmra.mrb[0].mxu0 %v1019
  %v1118 = vpop.f32.mrb[0].mxu0
  %v1119 = vadd.f32 %v1045, %v1118
  %v1120 = vpop.f32.mrb[0].mxu0
  %1121 = vdwg.mxu0
  %s1122 = scalar_lea.vmem %s1, 1408
  %v1123 = vld [vmem:[%s1122] sm:$0xff]
  %v1124 = vld [vmem:[%s1122 + $0x8] sm:$0xff]
  %v1125 = vld [vmem:[%s1122 + $0x10] sm:$0xff]
  %v1126 = vld [vmem:[%s1122 + $0x18] sm:$0xff]
  %v1127 = vld [vmem:[%s1122 + $0x20] sm:$0xff]
  %v1128 = vld [vmem:[%s1122 + $0x28] sm:$0xff]
  %v1129 = vld [vmem:[%s1122 + $0x30] sm:$0xff]
  %v1130 = vld [vmem:[%s1122 + $0x38] sm:$0xff]
  %v1131 = vld [vmem:[%s1122 + $0x40] sm:$0xff]
  %v1132 = vld [vmem:[%s1122 + $0x48] sm:$0xff]
  %v1133 = vld [vmem:[%s1122 + $0x50] sm:$0xff]
  %v1134 = vld [vmem:[%s1122 + $0x58] sm:$0xff]
  %v1135 = vld [vmem:[%s1122 + $0x60] sm:$0xff]
  %v1136 = vld [vmem:[%s1122 + $0x68] sm:$0xff]
  %v1137 = vld [vmem:[%s1122 + $0x70] sm:$0xff]
  %v1138 = vld [vmem:[%s1122 + $0x78] sm:$0xff]
  %s1139 = scalar_lea.vmem %s2, 11
  %v1140 = vld [vmem:[%s1139] sm:$0x1]
  %v1142 = vlaneseq
  %v1143 = vshrl.u32 %v1142, 7
  %v1144 = vsub.s32 0, %v1143
  %v1145 = vrot.slane %v1140, %v1144
  %1147 = vmatprep.subr.mxu0 0.0
  %1148 = vmatpush1.msra.mxu0 %v1123
  %1149 = vmatprep.subr.mxu0 0.0
  %1150 = vmatpush1.msra.mxu0 %v1124
  %1151 = vmatprep.subr.mxu0 0.0
  %1152 = vmatpush1.msra.mxu0 %v1125
  %1153 = vmatprep.subr.mxu0 0.0
  %1154 = vmatpush1.msra.mxu0 %v1126
  %1155 = vmatprep.subr.mxu0 0.0
  %1156 = vmatpush1.msra.mxu0 %v1127
  %1157 = vmatprep.subr.mxu0 0.0
  %1158 = vmatpush1.msra.mxu0 %v1128
  %1159 = vmatprep.subr.mxu0 0.0
  %1160 = vmatpush1.msra.mxu0 %v1129
  %1161 = vmatprep.subr.mxu0 0.0
  %1162 = vmatpush1.msra.mxu0 %v1130
  %1163 = vmatprep.subr.mxu0 0.0
  %1164 = vmatpush1.msra.mxu0 %v1131
  %1165 = vmatprep.subr.mxu0 0.0
  %1166 = vmatpush1.msra.mxu0 %v1132
  %1167 = vmatprep.subr.mxu0 0.0
  %1168 = vmatpush1.msra.mxu0 %v1133
  %1169 = vmatprep.subr.mxu0 0.0
  %1170 = vmatpush1.msra.mxu0 %v1134
  %1171 = vmatprep.subr.mxu0 0.0
  %1172 = vmatpush1.msra.mxu0 %v1135
  %1173 = vmatprep.subr.mxu0 0.0
  %1174 = vmatpush1.msra.mxu0 %v1136
  %1175 = vmatprep.subr.mxu0 0.0
  %1176 = vmatpush1.msra.mxu0 %v1137
  %1177 = vmatprep.subr.mxu0 0.0
  %1178 = vmatpush1.msra.mxu0 %v1138
  %1179 = vmatprep.subr.mxu0 0.0
  %1180 = vmatpush1.msra.mxu0 0.0
  %1181 = vmatprep.subr.mxu0 0.0
  %1182 = vmatpush1.msra.mxu0 0.0
  %1183 = vmatprep.subr.mxu0 0.0
  %1184 = vmatpush1.msra.mxu0 0.0
  %1185 = vmatprep.subr.mxu0 0.0
  %1186 = vmatpush1.msra.mxu0 0.0
  %1187 = vmatprep.subr.mxu0 0.0
  %1188 = vmatpush1.msra.mxu0 0.0
  %1189 = vmatprep.subr.mxu0 0.0
  %1190 = vmatpush1.msra.mxu0 0.0
  %1191 = vmatprep.subr.mxu0 0.0
  %1192 = vmatpush1.msra.mxu0 0.0
  %1193 = vmatprep.subr.mxu0 0.0
  %1194 = vmatpush1.msra.mxu0 0.0
  %1195 = vmatprep.subr.mxu0 0.0
  %1196 = vmatpush1.msra.mxu0 0.0
  %1197 = vmatprep.subr.mxu0 0.0
  %1198 = vmatpush1.msra.mxu0 0.0
  %1199 = vmatprep.subr.mxu0 0.0
  %1200 = vmatpush1.msra.mxu0 0.0
  %1201 = vmatprep.subr.mxu0 0.0
  %1202 = vmatpush1.msra.mxu0 0.0
  %1203 = vmatprep.subr.mxu0 0.0
  %1204 = vmatpush1.msra.mxu0 0.0
  %1205 = vmatprep.subr.mxu0 0.0
  %1206 = vmatpush1.msra.mxu0 0.0
  %1207 = vmatprep.subr.mxu0 0.0
  %1208 = vmatpush1.msra.mxu0 0.0
  %1209 = vmatprep.subr.mxu0 0.0
  %1210 = vmatpush1.msra.mxu0 0.0
  %1211 = vmatprep.mubr.f32.mxu0 0.0
  %1212 = vmatmul.mubr.f32.gmra.mrb[0].mxu0 %v1114
  %v1213 = vpop.f32.mrb[0].mxu0
  %v1214 = vadd.f32 %v1145, %v1213
  %v1215 = vpop.f32.mrb[0].mxu0
  %1216 = vmatprep.mubr.f32.mxu0 0.0
  %1217 = vmatmul.mubr.f32.gmra.mrb[0].mxu0 %v1119
  %v1218 = vpop.f32.mrb[0].mxu0
  %v1219 = vadd.f32 %v1145, %v1218
  %v1220 = vpop.f32.mrb[0].mxu0
  %1221 = vdwg.mxu0
  %s1222 = scalar_lea.vmem %s1, 1536
  %v1223 = vld [vmem:[%s1222] sm:$0xff]
  %v1224 = vld [vmem:[%s1222 + $0x8] sm:$0xff]
  %v1225 = vld [vmem:[%s1222 + $0x10] sm:$0xff]
  %v1226 = vld [vmem:[%s1222 + $0x18] sm:$0xff]
  %v1227 = vld [vmem:[%s1222 + $0x20] sm:$0xff]
  %v1228 = vld [vmem:[%s1222 + $0x28] sm:$0xff]
  %v1229 = vld [vmem:[%s1222 + $0x30] sm:$0xff]
  %v1230 = vld [vmem:[%s1222 + $0x38] sm:$0xff]
  %v1231 = vld [vmem:[%s1222 + $0x40] sm:$0xff]
  %v1232 = vld [vmem:[%s1222 + $0x48] sm:$0xff]
  %v1233 = vld [vmem:[%s1222 + $0x50] sm:$0xff]
  %v1234 = vld [vmem:[%s1222 + $0x58] sm:$0xff]
  %v1235 = vld [vmem:[%s1222 + $0x60] sm:$0xff]
  %v1236 = vld [vmem:[%s1222 + $0x68] sm:$0xff]
  %v1237 = vld [vmem:[%s1222 + $0x70] sm:$0xff]
  %v1238 = vld [vmem:[%s1222 + $0x78] sm:$0xff]
  %s1239 = scalar_lea.vmem %s2, 12
  %v1240 = vld [vmem:[%s1239] sm:$0x1]
  %v1242 = vlaneseq
  %v1243 = vshrl.u32 %v1242, 7
  %v1244 = vsub.s32 0, %v1243
  %v1245 = vrot.slane %v1240, %v1244
  %1247 = vmatprep.subr.mxu0 0.0
  %1248 = vmatpush1.msra.mxu0 %v1223
  %1249 = vmatprep.subr.mxu0 0.0
  %1250 = vmatpush1.msra.mxu0 %v1224
  %1251 = vmatprep.subr.mxu0 0.0
  %1252 = vmatpush1.msra.mxu0 %v1225
  %1253 = vmatprep.subr.mxu0 0.0
  %1254 = vmatpush1.msra.mxu0 %v1226
  %1255 = vmatprep.subr.mxu0 0.0
  %1256 = vmatpush1.msra.mxu0 %v1227
  %1257 = vmatprep.subr.mxu0 0.0
  %1258 = vmatpush1.msra.mxu0 %v1228
  %1259 = vmatprep.subr.mxu0 0.0
  %1260 = vmatpush1.msra.mxu0 %v1229
  %1261 = vmatprep.subr.mxu0 0.0
  %1262 = vmatpush1.msra.mxu0 %v1230
  %1263 = vmatprep.subr.mxu0 0.0
  %1264 = vmatpush1.msra.mxu0 %v1231
  %1265 = vmatprep.subr.mxu0 0.0
  %1266 = vmatpush1.msra.mxu0 %v1232
  %1267 = vmatprep.subr.mxu0 0.0
  %1268 = vmatpush1.msra.mxu0 %v1233
  %1269 = vmatprep.subr.mxu0 0.0
  %1270 = vmatpush1.msra.mxu0 %v1234
  %1271 = vmatprep.subr.mxu0 0.0
  %1272 = vmatpush1.msra.mxu0 %v1235
  %1273 = vmatprep.subr.mxu0 0.0
  %1274 = vmatpush1.msra.mxu0 %v1236
  %1275 = vmatprep.subr.mxu0 0.0
  %1276 = vmatpush1.msra.mxu0 %v1237
  %1277 = vmatprep.subr.mxu0 0.0
  %1278 = vmatpush1.msra.mxu0 %v1238
  %1279 = vmatprep.subr.mxu0 0.0
  %1280 = vmatpush1.msra.mxu0 0.0
  %1281 = vmatprep.subr.mxu0 0.0
  %1282 = vmatpush1.msra.mxu0 0.0
  %1283 = vmatprep.subr.mxu0 0.0
  %1284 = vmatpush1.msra.mxu0 0.0
  %1285 = vmatprep.subr.mxu0 0.0
  %1286 = vmatpush1.msra.mxu0 0.0
  %1287 = vmatprep.subr.mxu0 0.0
  %1288 = vmatpush1.msra.mxu0 0.0
  %1289 = vmatprep.subr.mxu0 0.0
  %1290 = vmatpush1.msra.mxu0 0.0
  %1291 = vmatprep.subr.mxu0 0.0
  %1292 = vmatpush1.msra.mxu0 0.0
  %1293 = vmatprep.subr.mxu0 0.0
  %1294 = vmatpush1.msra.mxu0 0.0
  %1295 = vmatprep.subr.mxu0 0.0
  %1296 = vmatpush1.msra.mxu0 0.0
  %1297 = vmatprep.subr.mxu0 0.0
  %1298 = vmatpush1.msra.mxu0 0.0
  %1299 = vmatprep.subr.mxu0 0.0
  %1300 = vmatpush1.msra.mxu0 0.0
  %1301 = vmatprep.subr.mxu0 0.0
  %1302 = vmatpush1.msra.mxu0 0.0
  %1303 = vmatprep.subr.mxu0 0.0
  %1304 = vmatpush1.msra.mxu0 0.0
  %1305 = vmatprep.subr.mxu0 0.0
  %1306 = vmatpush1.msra.mxu0 0.0
  %1307 = vmatprep.subr.mxu0 0.0
  %1308 = vmatpush1.msra.mxu0 0.0
  %1309 = vmatprep.subr.mxu0 0.0
  %1310 = vmatpush1.msra.mxu0 0.0
  %1311 = vmatprep.mubr.f32.mxu0 0.0
  %1312 = vmatmul.mubr.f32.gmra.mrb[0].mxu0 %v1214
  %v1313 = vpop.f32.mrb[0].mxu0
  %v1314 = vadd.f32 %v1245, %v1313
  %v1315 = vpop.f32.mrb[0].mxu0
  %1316 = vmatprep.mubr.f32.mxu0 0.0
  %1317 = vmatmul.mubr.f32.gmra.mrb[0].mxu0 %v1219
  %v1318 = vpop.f32.mrb[0].mxu0
  %v1319 = vadd.f32 %v1245, %v1318
  %v1320 = vpop.f32.mrb[0].mxu0
  %1321 = vdwg.mxu0
  %s1322 = scalar_lea.vmem %s1, 1664
  %v1323 = vld [vmem:[%s1322] sm:$0xff]
  %v1324 = vld [vmem:[%s1322 + $0x8] sm:$0xff]
  %v1325 = vld [vmem:[%s1322 + $0x10] sm:$0xff]
  %v1326 = vld [vmem:[%s1322 + $0x18] sm:$0xff]
  %v1327 = vld [vmem:[%s1322 + $0x20] sm:$0xff]
  %v1328 = vld [vmem:[%s1322 + $0x28] sm:$0xff]
  %v1329 = vld [vmem:[%s1322 + $0x30] sm:$0xff]
  %v1330 = vld [vmem:[%s1322 + $0x38] sm:$0xff]
  %v1331 = vld [vmem:[%s1322 + $0x40] sm:$0xff]
  %v1332 = vld [vmem:[%s1322 + $0x48] sm:$0xff]
  %v1333 = vld [vmem:[%s1322 + $0x50] sm:$0xff]
  %v1334 = vld [vmem:[%s1322 + $0x58] sm:$0xff]
  %v1335 = vld [vmem:[%s1322 + $0x60] sm:$0xff]
  %v1336 = vld [vmem:[%s1322 + $0x68] sm:$0xff]
  %v1337 = vld [vmem:[%s1322 + $0x70] sm:$0xff]
  %v1338 = vld [vmem:[%s1322 + $0x78] sm:$0xff]
  %s1339 = scalar_lea.vmem %s2, 13
  %v1340 = vld [vmem:[%s1339] sm:$0x1]
  %v1342 = vlaneseq
  %v1343 = vshrl.u32 %v1342, 7
  %v1344 = vsub.s32 0, %v1343
  %v1345 = vrot.slane %v1340, %v1344
  %1347 = vmatprep.subr.mxu0 0.0
  %1348 = vmatpush1.msra.mxu0 %v1323
  %1349 = vmatprep.subr.mxu0 0.0
  %1350 = vmatpush1.msra.mxu0 %v1324
  %1351 = vmatprep.subr.mxu0 0.0
  %1352 = vmatpush1.msra.mxu0 %v1325
  %1353 = vmatprep.subr.mxu0 0.0
  %1354 = vmatpush1.msra.mxu0 %v1326
  %1355 = vmatprep.subr.mxu0 0.0
  %1356 = vmatpush1.msra.mxu0 %v1327
  %1357 = vmatprep.subr.mxu0 0.0
  %1358 = vmatpush1.msra.mxu0 %v1328
  %1359 = vmatprep.subr.mxu0 0.0
  %1360 = vmatpush1.msra.mxu0 %v1329
  %1361 = vmatprep.subr.mxu0 0.0
  %1362 = vmatpush1.msra.mxu0 %v1330
  %1363 = vmatprep.subr.mxu0 0.0
  %1364 = vmatpush1.msra.mxu0 %v1331
  %1365 = vmatprep.subr.mxu0 0.0
  %1366 = vmatpush1.msra.mxu0 %v1332
  %1367 = vmatprep.subr.mxu0 0.0
  %1368 = vmatpush1.msra.mxu0 %v1333
  %1369 = vmatprep.subr.mxu0 0.0
  %1370 = vmatpush1.msra.mxu0 %v1334
  %1371 = vmatprep.subr.mxu0 0.0
  %1372 = vmatpush1.msra.mxu0 %v1335
  %1373 = vmatprep.subr.mxu0 0.0
  %1374 = vmatpush1.msra.mxu0 %v1336
  %1375 = vmatprep.subr.mxu0 0.0
  %1376 = vmatpush1.msra.mxu0 %v1337
  %1377 = vmatprep.subr.mxu0 0.0
  %1378 = vmatpush1.msra.mxu0 %v1338
  %1379 = vmatprep.subr.mxu0 0.0
  %1380 = vmatpush1.msra.mxu0 0.0
  %1381 = vmatprep.subr.mxu0 0.0
  %1382 = vmatpush1.msra.mxu0 0.0
  %1383 = vmatprep.subr.mxu0 0.0
  %1384 = vmatpush1.msra.mxu0 0.0
  %1385 = vmatprep.subr.mxu0 0.0
  %1386 = vmatpush1.msra.mxu0 0.0
  %1387 = vmatprep.subr.mxu0 0.0
  %1388 = vmatpush1.msra.mxu0 0.0
  %1389 = vmatprep.subr.mxu0 0.0
  %1390 = vmatpush1.msra.mxu0 0.0
  %1391 = vmatprep.subr.mxu0 0.0
  %1392 = vmatpush1.msra.mxu0 0.0
  %1393 = vmatprep.subr.mxu0 0.0
  %1394 = vmatpush1.msra.mxu0 0.0
  %1395 = vmatprep.subr.mxu0 0.0
  %1396 = vmatpush1.msra.mxu0 0.0
  %1397 = vmatprep.subr.mxu0 0.0
  %1398 = vmatpush1.msra.mxu0 0.0
  %1399 = vmatprep.subr.mxu0 0.0
  %1400 = vmatpush1.msra.mxu0 0.0
  %1401 = vmatprep.subr.mxu0 0.0
  %1402 = vmatpush1.msra.mxu0 0.0
  %1403 = vmatprep.subr.mxu0 0.0
  %1404 = vmatpush1.msra.mxu0 0.0
  %1405 = vmatprep.subr.mxu0 0.0
  %1406 = vmatpush1.msra.mxu0 0.0
  %1407 = vmatprep.subr.mxu0 0.0
  %1408 = vmatpush1.msra.mxu0 0.0
  %1409 = vmatprep.subr.mxu0 0.0
  %1410 = vmatpush1.msra.mxu0 0.0
  %1411 = vmatprep.mubr.f32.mxu0 0.0
  %1412 = vmatmul.mubr.f32.gmra.mrb[0].mxu0 %v1314
  %v1413 = vpop.f32.mrb[0].mxu0
  %v1414 = vadd.f32 %v1345, %v1413
  %v1415 = vpop.f32.mrb[0].mxu0
  %1416 = vmatprep.mubr.f32.mxu0 0.0
  %1417 = vmatmul.mubr.f32.gmra.mrb[0].mxu0 %v1319
  %v1418 = vpop.f32.mrb[0].mxu0
  %v1419 = vadd.f32 %v1345, %v1418
  %v1420 = vpop.f32.mrb[0].mxu0
  %1421 = vdwg.mxu0
  %s1422 = scalar_lea.vmem %s1, 1792
  %v1423 = vld [vmem:[%s1422] sm:$0xff]
  %v1424 = vld [vmem:[%s1422 + $0x8] sm:$0xff]
  %v1425 = vld [vmem:[%s1422 + $0x10] sm:$0xff]
  %v1426 = vld [vmem:[%s1422 + $0x18] sm:$0xff]
  %v1427 = vld [vmem:[%s1422 + $0x20] sm:$0xff]
  %v1428 = vld [vmem:[%s1422 + $0x28] sm:$0xff]
  %v1429 = vld [vmem:[%s1422 + $0x30] sm:$0xff]
  %v1430 = vld [vmem:[%s1422 + $0x38] sm:$0xff]
  %v1431 = vld [vmem:[%s1422 + $0x40] sm:$0xff]
  %v1432 = vld [vmem:[%s1422 + $0x48] sm:$0xff]
  %v1433 = vld [vmem:[%s1422 + $0x50] sm:$0xff]
  %v1434 = vld [vmem:[%s1422 + $0x58] sm:$0xff]
  %v1435 = vld [vmem:[%s1422 + $0x60] sm:$0xff]
  %v1436 = vld [vmem:[%s1422 + $0x68] sm:$0xff]
  %v1437 = vld [vmem:[%s1422 + $0x70] sm:$0xff]
  %v1438 = vld [vmem:[%s1422 + $0x78] sm:$0xff]
  %s1439 = scalar_lea.vmem %s2, 14
  %v1440 = vld [vmem:[%s1439] sm:$0x1]
  %v1442 = vlaneseq
  %v1443 = vshrl.u32 %v1442, 7
  %v1444 = vsub.s32 0, %v1443
  %v1445 = vrot.slane %v1440, %v1444
  %1447 = vmatprep.subr.mxu0 0.0
  %1448 = vmatpush1.msra.mxu0 %v1423
  %1449 = vmatprep.subr.mxu0 0.0
  %1450 = vmatpush1.msra.mxu0 %v1424
  %1451 = vmatprep.subr.mxu0 0.0
  %1452 = vmatpush1.msra.mxu0 %v1425
  %1453 = vmatprep.subr.mxu0 0.0
  %1454 = vmatpush1.msra.mxu0 %v1426
  %1455 = vmatprep.subr.mxu0 0.0
  %1456 = vmatpush1.msra.mxu0 %v1427
  %1457 = vmatprep.subr.mxu0 0.0
  %1458 = vmatpush1.msra.mxu0 %v1428
  %1459 = vmatprep.subr.mxu0 0.0
  %1460 = vmatpush1.msra.mxu0 %v1429
  %1461 = vmatprep.subr.mxu0 0.0
  %1462 = vmatpush1.msra.mxu0 %v1430
  %1463 = vmatprep.subr.mxu0 0.0
  %1464 = vmatpush1.msra.mxu0 %v1431
  %1465 = vmatprep.subr.mxu0 0.0
  %1466 = vmatpush1.msra.mxu0 %v1432
  %1467 = vmatprep.subr.mxu0 0.0
  %1468 = vmatpush1.msra.mxu0 %v1433
  %1469 = vmatprep.subr.mxu0 0.0
  %1470 = vmatpush1.msra.mxu0 %v1434
  %1471 = vmatprep.subr.mxu0 0.0
  %1472 = vmatpush1.msra.mxu0 %v1435
  %1473 = vmatprep.subr.mxu0 0.0
  %1474 = vmatpush1.msra.mxu0 %v1436
  %1475 = vmatprep.subr.mxu0 0.0
  %1476 = vmatpush1.msra.mxu0 %v1437
  %1477 = vmatprep.subr.mxu0 0.0
  %1478 = vmatpush1.msra.mxu0 %v1438
  %1479 = vmatprep.subr.mxu0 0.0
  %1480 = vmatpush1.msra.mxu0 0.0
  %1481 = vmatprep.subr.mxu0 0.0
  %1482 = vmatpush1.msra.mxu0 0.0
  %1483 = vmatprep.subr.mxu0 0.0
  %1484 = vmatpush1.msra.mxu0 0.0
  %1485 = vmatprep.subr.mxu0 0.0
  %1486 = vmatpush1.msra.mxu0 0.0
  %1487 = vmatprep.subr.mxu0 0.0
  %1488 = vmatpush1.msra.mxu0 0.0
  %1489 = vmatprep.subr.mxu0 0.0
  %1490 = vmatpush1.msra.mxu0 0.0
  %1491 = vmatprep.subr.mxu0 0.0
  %1492 = vmatpush1.msra.mxu0 0.0
  %1493 = vmatprep.subr.mxu0 0.0
  %1494 = vmatpush1.msra.mxu0 0.0
  %1495 = vmatprep.subr.mxu0 0.0
  %1496 = vmatpush1.msra.mxu0 0.0
  %1497 = vmatprep.subr.mxu0 0.0
  %1498 = vmatpush1.msra.mxu0 0.0
  %1499 = vmatprep.subr.mxu0 0.0
  %1500 = vmatpush1.msra.mxu0 0.0
  %1501 = vmatprep.subr.mxu0 0.0
  %1502 = vmatpush1.msra.mxu0 0.0
  %1503 = vmatprep.subr.mxu0 0.0
  %1504 = vmatpush1.msra.mxu0 0.0
  %1505 = vmatprep.subr.mxu0 0.0
  %1506 = vmatpush1.msra.mxu0 0.0
  %1507 = vmatprep.subr.mxu0 0.0
  %1508 = vmatpush1.msra.mxu0 0.0
  %1509 = vmatprep.subr.mxu0 0.0
  %1510 = vmatpush1.msra.mxu0 0.0
  %1511 = vmatprep.mubr.f32.mxu0 0.0
  %1512 = vmatmul.mubr.f32.gmra.mrb[0].mxu0 %v1414
  %v1513 = vpop.f32.mrb[0].mxu0
  %v1514 = vadd.f32 %v1445, %v1513
  %v1515 = vpop.f32.mrb[0].mxu0
  %1516 = vmatprep.mubr.f32.mxu0 0.0
  %1517 = vmatmul.mubr.f32.gmra.mrb[0].mxu0 %v1419
  %v1518 = vpop.f32.mrb[0].mxu0
  %v1519 = vadd.f32 %v1445, %v1518
  %v1520 = vpop.f32.mrb[0].mxu0
  %1521 = vdwg.mxu0
  %s1522 = scalar_lea.vmem %s1, 1920
  %v1523 = vld [vmem:[%s1522] sm:$0xff]
  %v1524 = vld [vmem:[%s1522 + $0x8] sm:$0xff]
  %v1525 = vld [vmem:[%s1522 + $0x10] sm:$0xff]
  %v1526 = vld [vmem:[%s1522 + $0x18] sm:$0xff]
  %v1527 = vld [vmem:[%s1522 + $0x20] sm:$0xff]
  %v1528 = vld [vmem:[%s1522 + $0x28] sm:$0xff]
  %v1529 = vld [vmem:[%s1522 + $0x30] sm:$0xff]
  %v1530 = vld [vmem:[%s1522 + $0x38] sm:$0xff]
  %v1531 = vld [vmem:[%s1522 + $0x40] sm:$0xff]
  %v1532 = vld [vmem:[%s1522 + $0x48] sm:$0xff]
  %v1533 = vld [vmem:[%s1522 + $0x50] sm:$0xff]
  %v1534 = vld [vmem:[%s1522 + $0x58] sm:$0xff]
  %v1535 = vld [vmem:[%s1522 + $0x60] sm:$0xff]
  %v1536 = vld [vmem:[%s1522 + $0x68] sm:$0xff]
  %v1537 = vld [vmem:[%s1522 + $0x70] sm:$0xff]
  %v1538 = vld [vmem:[%s1522 + $0x78] sm:$0xff]
  %s1539 = scalar_lea.vmem %s2, 15
  %v1540 = vld [vmem:[%s1539] sm:$0x1]
  %v1542 = vlaneseq
  %v1543 = vshrl.u32 %v1542, 7
  %v1544 = vsub.s32 0, %v1543
  %v1545 = vrot.slane %v1540, %v1544
  %1547 = vmatprep.subr.mxu0 0.0
  %1548 = vmatpush1.msra.mxu0 %v1523
  %1549 = vmatprep.subr.mxu0 0.0
  %1550 = vmatpush1.msra.mxu0 %v1524
  %1551 = vmatprep.subr.mxu0 0.0
  %1552 = vmatpush1.msra.mxu0 %v1525
  %1553 = vmatprep.subr.mxu0 0.0
  %1554 = vmatpush1.msra.mxu0 %v1526
  %1555 = vmatprep.subr.mxu0 0.0
  %1556 = vmatpush1.msra.mxu0 %v1527
  %1557 = vmatprep.subr.mxu0 0.0
  %1558 = vmatpush1.msra.mxu0 %v1528
  %1559 = vmatprep.subr.mxu0 0.0
  %1560 = vmatpush1.msra.mxu0 %v1529
  %1561 = vmatprep.subr.mxu0 0.0
  %1562 = vmatpush1.msra.mxu0 %v1530
  %1563 = vmatprep.subr.mxu0 0.0
  %1564 = vmatpush1.msra.mxu0 %v1531
  %1565 = vmatprep.subr.mxu0 0.0
  %1566 = vmatpush1.msra.mxu0 %v1532
  %1567 = vmatprep.subr.mxu0 0.0
  %1568 = vmatpush1.msra.mxu0 %v1533
  %1569 = vmatprep.subr.mxu0 0.0
  %1570 = vmatpush1.msra.mxu0 %v1534
  %1571 = vmatprep.subr.mxu0 0.0
  %1572 = vmatpush1.msra.mxu0 %v1535
  %1573 = vmatprep.subr.mxu0 0.0
  %1574 = vmatpush1.msra.mxu0 %v1536
  %1575 = vmatprep.subr.mxu0 0.0
  %1576 = vmatpush1.msra.mxu0 %v1537
  %1577 = vmatprep.subr.mxu0 0.0
  %1578 = vmatpush1.msra.mxu0 %v1538
  %1579 = vmatprep.subr.mxu0 0.0
  %1580 = vmatpush1.msra.mxu0 0.0
  %1581 = vmatprep.subr.mxu0 0.0
  %1582 = vmatpush1.msra.mxu0 0.0
  %1583 = vmatprep.subr.mxu0 0.0
  %1584 = vmatpush1.msra.mxu0 0.0
  %1585 = vmatprep.subr.mxu0 0.0
  %1586 = vmatpush1.msra.mxu0 0.0
  %1587 = vmatprep.subr.mxu0 0.0
  %1588 = vmatpush1.msra.mxu0 0.0
  %1589 = vmatprep.subr.mxu0 0.0
  %1590 = vmatpush1.msra.mxu0 0.0
  %1591 = vmatprep.subr.mxu0 0.0
  %1592 = vmatpush1.msra.mxu0 0.0
  %1593 = vmatprep.subr.mxu0 0.0
  %1594 = vmatpush1.msra.mxu0 0.0
  %1595 = vmatprep.subr.mxu0 0.0
  %1596 = vmatpush1.msra.mxu0 0.0
  %1597 = vmatprep.subr.mxu0 0.0
  %1598 = vmatpush1.msra.mxu0 0.0
  %1599 = vmatprep.subr.mxu0 0.0
  %1600 = vmatpush1.msra.mxu0 0.0
  %1601 = vmatprep.subr.mxu0 0.0
  %1602 = vmatpush1.msra.mxu0 0.0
  %1603 = vmatprep.subr.mxu0 0.0
  %1604 = vmatpush1.msra.mxu0 0.0
  %1605 = vmatprep.subr.mxu0 0.0
  %1606 = vmatpush1.msra.mxu0 0.0
  %1607 = vmatprep.subr.mxu0 0.0
  %1608 = vmatpush1.msra.mxu0 0.0
  %1609 = vmatprep.subr.mxu0 0.0
  %1610 = vmatpush1.msra.mxu0 0.0
  %1611 = vmatprep.mubr.f32.mxu0 0.0
  %1612 = vmatmul.mubr.f32.gmra.mrb[0].mxu0 %v1514
  %v1613 = vpop.f32.mrb[0].mxu0
  %v1614 = vadd.f32 %v1545, %v1613
  %v1615 = vpop.f32.mrb[0].mxu0
  %1616 = vmatprep.mubr.f32.mxu0 0.0
  %1617 = vmatmul.mubr.f32.gmra.mrb[0].mxu0 %v1519
  %v1618 = vpop.f32.mrb[0].mxu0
  %v1619 = vadd.f32 %v1545, %v1618
  %v1620 = vpop.f32.mrb[0].mxu0
  %1621 = vdwg.mxu0
  %s1622 = scalar_lea.vmem %s1, 2048
  %v1623 = vld [vmem:[%s1622] sm:$0xff]
  %v1624 = vld [vmem:[%s1622 + $0x8] sm:$0xff]
  %v1625 = vld [vmem:[%s1622 + $0x10] sm:$0xff]
  %v1626 = vld [vmem:[%s1622 + $0x18] sm:$0xff]
  %v1627 = vld [vmem:[%s1622 + $0x20] sm:$0xff]
  %v1628 = vld [vmem:[%s1622 + $0x28] sm:$0xff]
  %v1629 = vld [vmem:[%s1622 + $0x30] sm:$0xff]
  %v1630 = vld [vmem:[%s1622 + $0x38] sm:$0xff]
  %v1631 = vld [vmem:[%s1622 + $0x40] sm:$0xff]
  %v1632 = vld [vmem:[%s1622 + $0x48] sm:$0xff]
  %v1633 = vld [vmem:[%s1622 + $0x50] sm:$0xff]
  %v1634 = vld [vmem:[%s1622 + $0x58] sm:$0xff]
  %v1635 = vld [vmem:[%s1622 + $0x60] sm:$0xff]
  %v1636 = vld [vmem:[%s1622 + $0x68] sm:$0xff]
  %v1637 = vld [vmem:[%s1622 + $0x70] sm:$0xff]
  %v1638 = vld [vmem:[%s1622 + $0x78] sm:$0xff]
  %s1639 = scalar_lea.vmem %s2, 16
  %v1640 = vld [vmem:[%s1639] sm:$0x1]
  %v1642 = vlaneseq
  %v1643 = vshrl.u32 %v1642, 7
  %v1644 = vsub.s32 0, %v1643
  %v1645 = vrot.slane %v1640, %v1644
  %1647 = vmatprep.subr.mxu0 0.0
  %1648 = vmatpush1.msra.mxu0 %v1623
  %1649 = vmatprep.subr.mxu0 0.0
  %1650 = vmatpush1.msra.mxu0 %v1624
  %1651 = vmatprep.subr.mxu0 0.0
  %1652 = vmatpush1.msra.mxu0 %v1625
  %1653 = vmatprep.subr.mxu0 0.0
  %1654 = vmatpush1.msra.mxu0 %v1626
  %1655 = vmatprep.subr.mxu0 0.0
  %1656 = vmatpush1.msra.mxu0 %v1627
  %1657 = vmatprep.subr.mxu0 0.0
  %1658 = vmatpush1.msra.mxu0 %v1628
  %1659 = vmatprep.subr.mxu0 0.0
  %1660 = vmatpush1.msra.mxu0 %v1629
  %1661 = vmatprep.subr.mxu0 0.0
  %1662 = vmatpush1.msra.mxu0 %v1630
  %1663 = vmatprep.subr.mxu0 0.0
  %1664 = vmatpush1.msra.mxu0 %v1631
  %1665 = vmatprep.subr.mxu0 0.0
  %1666 = vmatpush1.msra.mxu0 %v1632
  %1667 = vmatprep.subr.mxu0 0.0
  %1668 = vmatpush1.msra.mxu0 %v1633
  %1669 = vmatprep.subr.mxu0 0.0
  %1670 = vmatpush1.msra.mxu0 %v1634
  %1671 = vmatprep.subr.mxu0 0.0
  %1672 = vmatpush1.msra.mxu0 %v1635
  %1673 = vmatprep.subr.mxu0 0.0
  %1674 = vmatpush1.msra.mxu0 %v1636
  %1675 = vmatprep.subr.mxu0 0.0
  %1676 = vmatpush1.msra.mxu0 %v1637
  %1677 = vmatprep.subr.mxu0 0.0
  %1678 = vmatpush1.msra.mxu0 %v1638
  %1679 = vmatprep.subr.mxu0 0.0
  %1680 = vmatpush1.msra.mxu0 0.0
  %1681 = vmatprep.subr.mxu0 0.0
  %1682 = vmatpush1.msra.mxu0 0.0
  %1683 = vmatprep.subr.mxu0 0.0
  %1684 = vmatpush1.msra.mxu0 0.0
  %1685 = vmatprep.subr.mxu0 0.0
  %1686 = vmatpush1.msra.mxu0 0.0
  %1687 = vmatprep.subr.mxu0 0.0
  %1688 = vmatpush1.msra.mxu0 0.0
  %1689 = vmatprep.subr.mxu0 0.0
  %1690 = vmatpush1.msra.mxu0 0.0
  %1691 = vmatprep.subr.mxu0 0.0
  %1692 = vmatpush1.msra.mxu0 0.0
  %1693 = vmatprep.subr.mxu0 0.0
  %1694 = vmatpush1.msra.mxu0 0.0
  %1695 = vmatprep.subr.mxu0 0.0
  %1696 = vmatpush1.msra.mxu0 0.0
  %1697 = vmatprep.subr.mxu0 0.0
  %1698 = vmatpush1.msra.mxu0 0.0
  %1699 = vmatprep.subr.mxu0 0.0
  %1700 = vmatpush1.msra.mxu0 0.0
  %1701 = vmatprep.subr.mxu0 0.0
  %1702 = vmatpush1.msra.mxu0 0.0
  %1703 = vmatprep.subr.mxu0 0.0
  %1704 = vmatpush1.msra.mxu0 0.0
  %1705 = vmatprep.subr.mxu0 0.0
  %1706 = vmatpush1.msra.mxu0 0.0
  %1707 = vmatprep.subr.mxu0 0.0
  %1708 = vmatpush1.msra.mxu0 0.0
  %1709 = vmatprep.subr.mxu0 0.0
  %1710 = vmatpush1.msra.mxu0 0.0
  %1711 = vmatprep.mubr.f32.mxu0 0.0
  %1712 = vmatmul.mubr.f32.gmra.mrb[0].mxu0 %v1614
  %v1713 = vpop.f32.mrb[0].mxu0
  %v1714 = vadd.f32 %v1645, %v1713
  %v1715 = vpop.f32.mrb[0].mxu0
  %1716 = vmatprep.mubr.f32.mxu0 0.0
  %1717 = vmatmul.mubr.f32.gmra.mrb[0].mxu0 %v1619
  %v1718 = vpop.f32.mrb[0].mxu0
  %v1719 = vadd.f32 %v1645, %v1718
  %v1720 = vpop.f32.mrb[0].mxu0
  %1721 = vdwg.mxu0
  %s1722 = scalar_lea.vmem %s1, 2176
  %v1723 = vld [vmem:[%s1722] sm:$0xff]
  %v1724 = vld [vmem:[%s1722 + $0x8] sm:$0xff]
  %v1725 = vld [vmem:[%s1722 + $0x10] sm:$0xff]
  %v1726 = vld [vmem:[%s1722 + $0x18] sm:$0xff]
  %v1727 = vld [vmem:[%s1722 + $0x20] sm:$0xff]
  %v1728 = vld [vmem:[%s1722 + $0x28] sm:$0xff]
  %v1729 = vld [vmem:[%s1722 + $0x30] sm:$0xff]
  %v1730 = vld [vmem:[%s1722 + $0x38] sm:$0xff]
  %v1731 = vld [vmem:[%s1722 + $0x40] sm:$0xff]
  %v1732 = vld [vmem:[%s1722 + $0x48] sm:$0xff]
  %v1733 = vld [vmem:[%s1722 + $0x50] sm:$0xff]
  %v1734 = vld [vmem:[%s1722 + $0x58] sm:$0xff]
  %v1735 = vld [vmem:[%s1722 + $0x60] sm:$0xff]
  %v1736 = vld [vmem:[%s1722 + $0x68] sm:$0xff]
  %v1737 = vld [vmem:[%s1722 + $0x70] sm:$0xff]
  %v1738 = vld [vmem:[%s1722 + $0x78] sm:$0xff]
  %s1739 = scalar_lea.vmem %s2, 17
  %v1740 = vld [vmem:[%s1739] sm:$0x1]
  %v1742 = vlaneseq
  %v1743 = vshrl.u32 %v1742, 7
  %v1744 = vsub.s32 0, %v1743
  %v1745 = vrot.slane %v1740, %v1744
  %1747 = vmatprep.subr.mxu0 0.0
  %1748 = vmatpush1.msra.mxu0 %v1723
  %1749 = vmatprep.subr.mxu0 0.0
  %1750 = vmatpush1.msra.mxu0 %v1724
  %1751 = vmatprep.subr.mxu0 0.0
  %1752 = vmatpush1.msra.mxu0 %v1725
  %1753 = vmatprep.subr.mxu0 0.0
  %1754 = vmatpush1.msra.mxu0 %v1726
  %1755 = vmatprep.subr.mxu0 0.0
  %1756 = vmatpush1.msra.mxu0 %v1727
  %1757 = vmatprep.subr.mxu0 0.0
  %1758 = vmatpush1.msra.mxu0 %v1728
  %1759 = vmatprep.subr.mxu0 0.0
  %1760 = vmatpush1.msra.mxu0 %v1729
  %1761 = vmatprep.subr.mxu0 0.0
  %1762 = vmatpush1.msra.mxu0 %v1730
  %1763 = vmatprep.subr.mxu0 0.0
  %1764 = vmatpush1.msra.mxu0 %v1731
  %1765 = vmatprep.subr.mxu0 0.0
  %1766 = vmatpush1.msra.mxu0 %v1732
  %1767 = vmatprep.subr.mxu0 0.0
  %1768 = vmatpush1.msra.mxu0 %v1733
  %1769 = vmatprep.subr.mxu0 0.0
  %1770 = vmatpush1.msra.mxu0 %v1734
  %1771 = vmatprep.subr.mxu0 0.0
  %1772 = vmatpush1.msra.mxu0 %v1735
  %1773 = vmatprep.subr.mxu0 0.0
  %1774 = vmatpush1.msra.mxu0 %v1736
  %1775 = vmatprep.subr.mxu0 0.0
  %1776 = vmatpush1.msra.mxu0 %v1737
  %1777 = vmatprep.subr.mxu0 0.0
  %1778 = vmatpush1.msra.mxu0 %v1738
  %1779 = vmatprep.subr.mxu0 0.0
  %1780 = vmatpush1.msra.mxu0 0.0
  %1781 = vmatprep.subr.mxu0 0.0
  %1782 = vmatpush1.msra.mxu0 0.0
  %1783 = vmatprep.subr.mxu0 0.0
  %1784 = vmatpush1.msra.mxu0 0.0
  %1785 = vmatprep.subr.mxu0 0.0
  %1786 = vmatpush1.msra.mxu0 0.0
  %1787 = vmatprep.subr.mxu0 0.0
  %1788 = vmatpush1.msra.mxu0 0.0
  %1789 = vmatprep.subr.mxu0 0.0
  %1790 = vmatpush1.msra.mxu0 0.0
  %1791 = vmatprep.subr.mxu0 0.0
  %1792 = vmatpush1.msra.mxu0 0.0
  %1793 = vmatprep.subr.mxu0 0.0
  %1794 = vmatpush1.msra.mxu0 0.0
  %1795 = vmatprep.subr.mxu0 0.0
  %1796 = vmatpush1.msra.mxu0 0.0
  %1797 = vmatprep.subr.mxu0 0.0
  %1798 = vmatpush1.msra.mxu0 0.0
  %1799 = vmatprep.subr.mxu0 0.0
  %1800 = vmatpush1.msra.mxu0 0.0
  %1801 = vmatprep.subr.mxu0 0.0
  %1802 = vmatpush1.msra.mxu0 0.0
  %1803 = vmatprep.subr.mxu0 0.0
  %1804 = vmatpush1.msra.mxu0 0.0
  %1805 = vmatprep.subr.mxu0 0.0
  %1806 = vmatpush1.msra.mxu0 0.0
  %1807 = vmatprep.subr.mxu0 0.0
  %1808 = vmatpush1.msra.mxu0 0.0
  %1809 = vmatprep.subr.mxu0 0.0
  %1810 = vmatpush1.msra.mxu0 0.0
  %1811 = vmatprep.mubr.f32.mxu0 0.0
  %1812 = vmatmul.mubr.f32.gmra.mrb[0].mxu0 %v1714
  %v1813 = vpop.f32.mrb[0].mxu0
  %v1814 = vadd.f32 %v1745, %v1813
  %v1815 = vpop.f32.mrb[0].mxu0
  %1816 = vmatprep.mubr.f32.mxu0 0.0
  %1817 = vmatmul.mubr.f32.gmra.mrb[0].mxu0 %v1719
  %v1818 = vpop.f32.mrb[0].mxu0
  %v1819 = vadd.f32 %v1745, %v1818
  %v1820 = vpop.f32.mrb[0].mxu0
  %1821 = vdwg.mxu0
  %s1822 = scalar_lea.vmem %s1, 2304
  %v1823 = vld [vmem:[%s1822] sm:$0xff]
  %v1824 = vld [vmem:[%s1822 + $0x8] sm:$0xff]
  %v1825 = vld [vmem:[%s1822 + $0x10] sm:$0xff]
  %v1826 = vld [vmem:[%s1822 + $0x18] sm:$0xff]
  %v1827 = vld [vmem:[%s1822 + $0x20] sm:$0xff]
  %v1828 = vld [vmem:[%s1822 + $0x28] sm:$0xff]
  %v1829 = vld [vmem:[%s1822 + $0x30] sm:$0xff]
  %v1830 = vld [vmem:[%s1822 + $0x38] sm:$0xff]
  %v1831 = vld [vmem:[%s1822 + $0x40] sm:$0xff]
  %v1832 = vld [vmem:[%s1822 + $0x48] sm:$0xff]
  %v1833 = vld [vmem:[%s1822 + $0x50] sm:$0xff]
  %v1834 = vld [vmem:[%s1822 + $0x58] sm:$0xff]
  %v1835 = vld [vmem:[%s1822 + $0x60] sm:$0xff]
  %v1836 = vld [vmem:[%s1822 + $0x68] sm:$0xff]
  %v1837 = vld [vmem:[%s1822 + $0x70] sm:$0xff]
  %v1838 = vld [vmem:[%s1822 + $0x78] sm:$0xff]
  %s1839 = scalar_lea.vmem %s2, 18
  %v1840 = vld [vmem:[%s1839] sm:$0x1]
  %v1842 = vlaneseq
  %v1843 = vshrl.u32 %v1842, 7
  %v1844 = vsub.s32 0, %v1843
  %v1845 = vrot.slane %v1840, %v1844
  %1847 = vmatprep.subr.mxu0 0.0
  %1848 = vmatpush1.msra.mxu0 %v1823
  %1849 = vmatprep.subr.mxu0 0.0
  %1850 = vmatpush1.msra.mxu0 %v1824
  %1851 = vmatprep.subr.mxu0 0.0
  %1852 = vmatpush1.msra.mxu0 %v1825
  %1853 = vmatprep.subr.mxu0 0.0
  %1854 = vmatpush1.msra.mxu0 %v1826
  %1855 = vmatprep.subr.mxu0 0.0
  %1856 = vmatpush1.msra.mxu0 %v1827
  %1857 = vmatprep.subr.mxu0 0.0
  %1858 = vmatpush1.msra.mxu0 %v1828
  %1859 = vmatprep.subr.mxu0 0.0
  %1860 = vmatpush1.msra.mxu0 %v1829
  %1861 = vmatprep.subr.mxu0 0.0
  %1862 = vmatpush1.msra.mxu0 %v1830
  %1863 = vmatprep.subr.mxu0 0.0
  %1864 = vmatpush1.msra.mxu0 %v1831
  %1865 = vmatprep.subr.mxu0 0.0
  %1866 = vmatpush1.msra.mxu0 %v1832
  %1867 = vmatprep.subr.mxu0 0.0
  %1868 = vmatpush1.msra.mxu0 %v1833
  %1869 = vmatprep.subr.mxu0 0.0
  %1870 = vmatpush1.msra.mxu0 %v1834
  %1871 = vmatprep.subr.mxu0 0.0
  %1872 = vmatpush1.msra.mxu0 %v1835
  %1873 = vmatprep.subr.mxu0 0.0
  %1874 = vmatpush1.msra.mxu0 %v1836
  %1875 = vmatprep.subr.mxu0 0.0
  %1876 = vmatpush1.msra.mxu0 %v1837
  %1877 = vmatprep.subr.mxu0 0.0
  %1878 = vmatpush1.msra.mxu0 %v1838
  %1879 = vmatprep.subr.mxu0 0.0
  %1880 = vmatpush1.msra.mxu0 0.0
  %1881 = vmatprep.subr.mxu0 0.0
  %1882 = vmatpush1.msra.mxu0 0.0
  %1883 = vmatprep.subr.mxu0 0.0
  %1884 = vmatpush1.msra.mxu0 0.0
  %1885 = vmatprep.subr.mxu0 0.0
  %1886 = vmatpush1.msra.mxu0 0.0
  %1887 = vmatprep.subr.mxu0 0.0
  %1888 = vmatpush1.msra.mxu0 0.0
  %1889 = vmatprep.subr.mxu0 0.0
  %1890 = vmatpush1.msra.mxu0 0.0
  %1891 = vmatprep.subr.mxu0 0.0
  %1892 = vmatpush1.msra.mxu0 0.0
  %1893 = vmatprep.subr.mxu0 0.0
  %1894 = vmatpush1.msra.mxu0 0.0
  %1895 = vmatprep.subr.mxu0 0.0
  %1896 = vmatpush1.msra.mxu0 0.0
  %1897 = vmatprep.subr.mxu0 0.0
  %1898 = vmatpush1.msra.mxu0 0.0
  %1899 = vmatprep.subr.mxu0 0.0
  %1900 = vmatpush1.msra.mxu0 0.0
  %1901 = vmatprep.subr.mxu0 0.0
  %1902 = vmatpush1.msra.mxu0 0.0
  %1903 = vmatprep.subr.mxu0 0.0
  %1904 = vmatpush1.msra.mxu0 0.0
  %1905 = vmatprep.subr.mxu0 0.0
  %1906 = vmatpush1.msra.mxu0 0.0
  %1907 = vmatprep.subr.mxu0 0.0
  %1908 = vmatpush1.msra.mxu0 0.0
  %1909 = vmatprep.subr.mxu0 0.0
  %1910 = vmatpush1.msra.mxu0 0.0
  %1911 = vmatprep.mubr.f32.mxu0 0.0
  %1912 = vmatmul.mubr.f32.gmra.mrb[0].mxu0 %v1814
  %v1913 = vpop.f32.mrb[0].mxu0
  %v1914 = vadd.f32 %v1845, %v1913
  %v1915 = vpop.f32.mrb[0].mxu0
  %1916 = vmatprep.mubr.f32.mxu0 0.0
  %1917 = vmatmul.mubr.f32.gmra.mrb[0].mxu0 %v1819
  %v1918 = vpop.f32.mrb[0].mxu0
  %v1919 = vadd.f32 %v1845, %v1918
  %v1920 = vpop.f32.mrb[0].mxu0
  %1921 = vdwg.mxu0
  %s1922 = scalar_lea.vmem %s1, 2432
  %v1923 = vld [vmem:[%s1922] sm:$0xff]
  %v1924 = vld [vmem:[%s1922 + $0x8] sm:$0xff]
  %v1925 = vld [vmem:[%s1922 + $0x10] sm:$0xff]
  %v1926 = vld [vmem:[%s1922 + $0x18] sm:$0xff]
  %v1927 = vld [vmem:[%s1922 + $0x20] sm:$0xff]
  %v1928 = vld [vmem:[%s1922 + $0x28] sm:$0xff]
  %v1929 = vld [vmem:[%s1922 + $0x30] sm:$0xff]
  %v1930 = vld [vmem:[%s1922 + $0x38] sm:$0xff]
  %v1931 = vld [vmem:[%s1922 + $0x40] sm:$0xff]
  %v1932 = vld [vmem:[%s1922 + $0x48] sm:$0xff]
  %v1933 = vld [vmem:[%s1922 + $0x50] sm:$0xff]
  %v1934 = vld [vmem:[%s1922 + $0x58] sm:$0xff]
  %v1935 = vld [vmem:[%s1922 + $0x60] sm:$0xff]
  %v1936 = vld [vmem:[%s1922 + $0x68] sm:$0xff]
  %v1937 = vld [vmem:[%s1922 + $0x70] sm:$0xff]
  %v1938 = vld [vmem:[%s1922 + $0x78] sm:$0xff]
  %s1939 = scalar_lea.vmem %s2, 19
  %v1940 = vld [vmem:[%s1939] sm:$0x1]
  %v1942 = vlaneseq
  %v1943 = vshrl.u32 %v1942, 7
  %v1944 = vsub.s32 0, %v1943
  %v1945 = vrot.slane %v1940, %v1944
  %1947 = vmatprep.subr.mxu0 0.0
  %1948 = vmatpush1.msra.mxu0 %v1923
  %1949 = vmatprep.subr.mxu0 0.0
  %1950 = vmatpush1.msra.mxu0 %v1924
  %1951 = vmatprep.subr.mxu0 0.0
  %1952 = vmatpush1.msra.mxu0 %v1925
  %1953 = vmatprep.subr.mxu0 0.0
  %1954 = vmatpush1.msra.mxu0 %v1926
  %1955 = vmatprep.subr.mxu0 0.0
  %1956 = vmatpush1.msra.mxu0 %v1927
  %1957 = vmatprep.subr.mxu0 0.0
  %1958 = vmatpush1.msra.mxu0 %v1928
  %1959 = vmatprep.subr.mxu0 0.0
  %1960 = vmatpush1.msra.mxu0 %v1929
  %1961 = vmatprep.subr.mxu0 0.0
  %1962 = vmatpush1.msra.mxu0 %v1930
  %1963 = vmatprep.subr.mxu0 0.0
  %1964 = vmatpush1.msra.mxu0 %v1931
  %1965 = vmatprep.subr.mxu0 0.0
  %1966 = vmatpush1.msra.mxu0 %v1932
  %1967 = vmatprep.subr.mxu0 0.0
  %1968 = vmatpush1.msra.mxu0 %v1933
  %1969 = vmatprep.subr.mxu0 0.0
  %1970 = vmatpush1.msra.mxu0 %v1934
  %1971 = vmatprep.subr.mxu0 0.0
  %1972 = vmatpush1.msra.mxu0 %v1935
  %1973 = vmatprep.subr.mxu0 0.0
  %1974 = vmatpush1.msra.mxu0 %v1936
  %1975 = vmatprep.subr.mxu0 0.0
  %1976 = vmatpush1.msra.mxu0 %v1937
  %1977 = vmatprep.subr.mxu0 0.0
  %1978 = vmatpush1.msra.mxu0 %v1938
  %1979 = vmatprep.subr.mxu0 0.0
  %1980 = vmatpush1.msra.mxu0 0.0
  %1981 = vmatprep.subr.mxu0 0.0
  %1982 = vmatpush1.msra.mxu0 0.0
  %1983 = vmatprep.subr.mxu0 0.0
  %1984 = vmatpush1.msra.mxu0 0.0
  %1985 = vmatprep.subr.mxu0 0.0
  %1986 = vmatpush1.msra.mxu0 0.0
  %1987 = vmatprep.subr.mxu0 0.0
  %1988 = vmatpush1.msra.mxu0 0.0
  %1989 = vmatprep.subr.mxu0 0.0
  %1990 = vmatpush1.msra.mxu0 0.0
  %1991 = vmatprep.subr.mxu0 0.0
  %1992 = vmatpush1.msra.mxu0 0.0
  %1993 = vmatprep.subr.mxu0 0.0
  %1994 = vmatpush1.msra.mxu0 0.0
  %1995 = vmatprep.subr.mxu0 0.0
  %1996 = vmatpush1.msra.mxu0 0.0
  %1997 = vmatprep.subr.mxu0 0.0
  %1998 = vmatpush1.msra.mxu0 0.0
  %1999 = vmatprep.subr.mxu0 0.0
  %2000 = vmatpush1.msra.mxu0 0.0
  %2001 = vmatprep.subr.mxu0 0.0
  %2002 = vmatpush1.msra.mxu0 0.0
  %2003 = vmatprep.subr.mxu0 0.0
  %2004 = vmatpush1.msra.mxu0 0.0
  %2005 = vmatprep.subr.mxu0 0.0
  %2006 = vmatpush1.msra.mxu0 0.0
  %2007 = vmatprep.subr.mxu0 0.0
  %2008 = vmatpush1.msra.mxu0 0.0
  %2009 = vmatprep.subr.mxu0 0.0
  %2010 = vmatpush1.msra.mxu0 0.0
  %2011 = vmatprep.mubr.f32.mxu0 0.0
  %2012 = vmatmul.mubr.f32.gmra.mrb[0].mxu0 %v1914
  %v2013 = vpop.f32.mrb[0].mxu0
  %v2014 = vadd.f32 %v1945, %v2013
  %v2015 = vpop.f32.mrb[0].mxu0
  %2016 = vmatprep.mubr.f32.mxu0 0.0
  %2017 = vmatmul.mubr.f32.gmra.mrb[0].mxu0 %v1919
  %v2018 = vpop.f32.mrb[0].mxu0
  %v2019 = vadd.f32 %v1945, %v2018
  %v2020 = vpop.f32.mrb[0].mxu0
  %2021 = vdwg.mxu0
  %2022 = vst [vmem:[#allocation2] sm:$0xff] %v2014
  %2023 = vst [vmem:[#allocation2 + $0x8] sm:$0xff] %v2019
  // Predicated region
  $region18: #{hit_model_forward.1} parent=0 // pred_check
    %p2024 = pneg %p14
  $region19: #{hit_model_forward.1} parent=0 // pred_check_branch
    %2026 = sbr.rel (%p2024) target = $region21
  $region20: #{hit_model_forward.1} parent=0 // pred_region
    %2027 = vst [vmem:[%s3] sm:$0xff] %v2014
    %2028 = vst [vmem:[%s3 + $0x8] sm:$0xff] %v2019
  $region21: #{hit_model_forward.1} parent=0 // pred_fallthru
    _
  // Predicated region
  $region22: #{hit_model_forward.1} parent=0 // pred_check
    _
  $region23: #{hit_model_forward.1} parent=0 // pred_check_branch
    %2030 = sbr.rel (0) target = $region25
  $region24: #{hit_model_forward.1} parent=0 // pred_region
    _
  $region25: #{hit_model_forward.1} parent=0 // pred_fallthru
    _
  // Predicated region
  $region26: #{hit_model_forward.1} parent=0 // pred_check
    _
  $region27: #{hit_model_forward.1} parent=0 // pred_check_branch
    %2032 = sbr.rel (0) target = $region29
  $region28: #{hit_model_forward.1} parent=0 // pred_region
    _
  $region29: #{hit_model_forward.1} parent=0 // pred_fallthru
    _

</llo_original>
